<compile_context>
chip_gen: v5e
topology: v5e:2x2
jax: 0.10.0
libtpu: 0.0.40
codegen_flags: <defaults>
</compile_context>

<pallas_src>
import functools
import math

import jax
import jax.numpy as jnp
from jax.experimental import pallas as pl
from jax.experimental.pallas import tpu as pltpu


# ----------------------------------------------------------------------------
# Fused Pallas kernel
# ----------------------------------------------------------------------------
def _fused_cnn_kernel(*refs, num_layers):
    """refs = (x, w0, w1..w_{L-1}, beta, out).

    x    : (block_rows, patch*cin)  layer-0 patches; rows ordered
                                    bit-reversed-spatial major, batch minor
    w0   : (patch*cin, h)           1/sqrt(cin) already folded in
    w_l  : (2h, h)                  l >= 1, [patch-0 rows ; patch-1 rows],
                                    1/sqrt(h) already folded in
    beta : (h, out_pad)             1/(dlast*h) already folded in
    out  : (TB, out_pad)
    """
    x_ref = refs[0]
    w_refs = refs[1:1 + num_layers]
    beta_ref = refs[1 + num_layers]
    out_ref = refs[2 + num_layers]
    f32 = jnp.float32

    x = x_ref[...]                              # (block_rows, K0)
    w0 = w_refs[0][...]                         # (K0, h)
    cd = w0.dtype
    m = x.shape[0]

    # ---- layer 0 on the MXU (K is tiny, but the MXU is idle here and this
    # avoids the cross-lane broadcast FMA loop of the previous version).
    y = jnp.maximum(jnp.dot(x, w0, preferred_element_type=f32), 0.0)   # (m, h)

    # ---- layers 1 .. L-1: bit-reversed row order means a spatial patch pair
    # is (row r of the top half, row r of the bottom half).  Concatenate the
    # halves along lanes (128-aligned, cheap) and do ONE K=2h MXU matmul.
    for l in range(1, num_layers):
        m //= 2
        a = jnp.concatenate([y[:m, :], y[m:, :]], axis=1).astype(cd)   # (m, 2h)
        acc = jnp.dot(a, w_refs[l][...], preferred_element_type=f32)   # (m, h)
        y = jnp.maximum(acc, 0.0)

    # ---- head: last spatial dim is 1 (d = 2**num_layers) so the mean is the
    # identity; 1/dlast and 1/h are folded into beta.
    beta = beta_ref[...]
    out_ref[...] = jnp.dot(y.astype(beta.dtype), beta,
                           preferred_element_type=f32).astype(out_ref.dtype)


# ----------------------------------------------------------------------------
# Helpers
# ----------------------------------------------------------------------------
def _bit_reverse_permutation(n):
    bits = n.bit_length() - 1
    assert (1 << bits) == n, "spatial size must be a power of two"
    perm = []
    for i in range(n):
        r, v = 0, i
        for _ in range(bits):
            r = (r << 1) | (v & 1)
            v >>= 1
        perm.append(r)
    return perm


def _vmem_capacity_bytes():
    """Per-core VMEM capacity; conservative (v7x) fallback if unavailable."""
    try:
        info = pltpu.get_tpu_info()
        for name in ("vmem_capacity_bytes", "vmem_size_bytes", "vmem_bytes"):
            v = getattr(info, name, None)
            if v:
                return int(v)
    except Exception:
        pass
    return 64 << 20


def _choose_batch_tile(bs, dout0, h, k0, out_pad, item, w_bytes, vmem_budget):
    """Largest batch tile (multiple of 8, divisor of bs) whose working set fits
    the VMEM budget, preferring >= 2 (ideally an even number of) grid steps so
    the single 'parallel' axis pipelines and splits across v7x's two cores."""
    # Per activation row: lane-padded double-buffered layer-0 input plus a few
    # live f32/bf16 activation copies at the widest layer.
    per_row = 2 * max(k0, 128) * item + h * (4 * 4 + 2 * item)
    per_batch = dout0 * per_row + 2 * out_pad * 4      # + double-buffered output
    budget = vmem_budget - 2 * w_bytes - (4 << 20)     # resident weights + slack
    max_tb = max(1, budget // max(per_batch, 1))

    cands = [t for t in range(8, bs, 8) if bs % t == 0]
    fitting = [t for t in cands if t <= max_tb]
    even = [t for t in fitting if (bs // t) % 2 == 0]
    if even:
        return max(even)
    if fitting:
        return max(fitting)
    if cands:
        return min(cands)          # nothing fits the budget: smallest legal tile
    return bs                      # no multiple-of-8 proper divisor: one tile


def _make_in_specs(block_rows, k0, h, out_pad, num_layers, weight_buffers):
    """BlockSpecs; constant-index weights optionally single-buffered."""
    kwargs = {}
    if weight_buffers is not None:
        kwargs = dict(pipeline_mode=pl.Buffered(weight_buffers))
    specs = [pl.BlockSpec((block_rows, k0), lambda i: (i, 0))]
    specs.append(pl.BlockSpec((k0, h), lambda i: (0, 0), **kwargs))
    specs += [pl.BlockSpec((2 * h, h), lambda i: (0, 0), **kwargs)
              for _ in range(num_layers - 1)]
    specs.append(pl.BlockSpec((h, out_pad), lambda i: (0, 0), **kwargs))
    return specs


# ----------------------------------------------------------------------------
# Wrapper: full CNNLayerWise forward in one pallas_call
# ----------------------------------------------------------------------------
def cnn_layerwise_forward(x, weights, beta, *, use_bf16=True):
    bs, cin, d = x.shape
    num_layers = len(weights)
    h = weights[0].shape[0]
    out_dim = beta.shape[1]
    patch = 2
    assert d == patch ** num_layers, "CNNLayerWise geometry requires d == 2**num_layers"
    for l, w in enumerate(weights):
        assert w.shape == (h, (cin if l == 0 else h), 1, patch), w.shape

    compute_dtype = jnp.bfloat16 if use_bf16 else jnp.float32
    item = jnp.dtype(compute_dtype).itemsize
    dout0 = d // patch
    k0 = patch * cin
    out_pad = max(128, ((out_dim + 127) // 128) * 128)   # lane-dense output store

    # --- weights in matmul layout, per-layer scales and head scale folded in
    #     (scaled in f32 BEFORE the bf16 cast) --------------------------------
    scale0 = 1.0 / math.sqrt(cin)
    w0m = (jnp.transpose(weights[0][:, :, 0, :], (2, 1, 0)).reshape(k0, h)
           * scale0).astype(compute_dtype)                           # (k0, h)
    scale_h = 1.0 / math.sqrt(h)
    wls = [(jnp.transpose(w[:, :, 0, :], (2, 1, 0)).reshape(patch * h, h)
            * scale_h).astype(compute_dtype) for w in weights[1:]]   # (2h, h)
    dlast = d // (patch ** num_layers)                   # == 1 per module spec
    head_scale = 1.0 / (dlast * h)
    beta_p = jnp.zeros((h, out_pad), compute_dtype).at[:, :out_dim].set(
        (beta.astype(jnp.float32) * head_scale).astype(compute_dtype))

    # --- generation-aware tiling ----------------------------------------------
    w_bytes = (k0 * h + (num_layers - 1) * patch * h * h + h * out_pad) * item
    vmem_cap = _vmem_capacity_bytes()
    tb = _choose_batch_tile(bs, dout0, h, k0, out_pad, item, w_bytes,
                            int(vmem_cap * 0.75))
    ntiles = bs // tb
    block_rows = tb * dout0
    vmem_limit = int(vmem_cap * 0.8)     # headroom: never the full physical VMEM

    # --- layer-0 patch gather + bit-reversed spatial ordering (layout only,
    #     one pass over the small input tensor, done by XLA) -------------------
    brev = jnp.asarray(_bit_reverse_permutation(dout0), dtype=jnp.int32)
    patches = x.reshape(bs, cin, dout0, patch).transpose(0, 2, 3, 1)  # (bs,d0,p,cin)
    patches = jnp.take(patches, brev, axis=1)                         # bit-reversed
    patches = patches.reshape(ntiles, tb, dout0, k0).transpose(0, 2, 1, 3)
    xm = patches.reshape(ntiles * block_rows, k0).astype(compute_dtype)

    # --- cost estimate ---------------------------------------------------------
    flops = 2 * bs * dout0 * k0 * h
    rows = bs * dout0
    for _ in range(1, num_layers):
        rows //= 2
        flops += 2 * rows * (patch * h) * h
    flops += 2 * bs * h * out_pad
    w_elems = k0 * h + (num_layers - 1) * patch * h * h + h * out_pad
    bytes_accessed = (bs * dout0 * k0 + w_elems) * item + bs * out_pad * 4
    cost = pl.CostEstimate(flops=flops, transcendentals=0,
                           bytes_accessed=bytes_accessed)

    kernel = functools.partial(_fused_cnn_kernel, num_layers=num_layers)
    out_specs = pl.BlockSpec((tb, out_pad), lambda i: (i, 0))

    out_padded = None
    last_err = None
    # First attempt single-buffers the constant weight/beta tiles; fall back to
    # default double-buffering if this Pallas build rejects pl.Buffered(1).
    for weight_buffers in (1, None):
        try:
            out_padded = pl.pallas_call(
                kernel,
                out_shape=jax.ShapeDtypeStruct((bs, out_pad), jnp.float32),
                grid=(ntiles,),
                in_specs=_make_in_specs(block_rows, k0, h, out_pad, num_layers,
                                        weight_buffers),
                out_specs=out_specs,
                compiler_params=pltpu.CompilerParams(
                    dimension_semantics=("parallel",),
                    vmem_limit_bytes=vmem_limit),
                cost_estimate=cost,
            )(xm, w0m, *wls, beta_p)
            break
        except Exception as err:  # noqa: BLE001 — retry with default buffering
            last_err = err
    if out_padded is None:
        raise last_err
    return out_padded[:, :out_dim]


# ----------------------------------------------------------------------------
# Params + pure-JAX reference (mirrors the PyTorch forward)
# ----------------------------------------------------------------------------
def init_cnn_layerwise_params(key, input_channels, h, out_dim, num_layers, patch_size=2):
    keys = jax.random.split(key, num_layers + 1)
    weights = []
    for l in range(num_layers):
        cin = input_channels if l == 0 else h
        weights.append(jax.random.normal(keys[l], (h, cin, 1, patch_size),
                                         dtype=jnp.float32))
    beta = jax.random.normal(keys[-1], (h, out_dim), dtype=jnp.float32)
    return weights, beta


def _reference_forward(x, weights, beta, *, operand_dtype=jnp.float32,
                       fold_scales=False):
    """Mirrors the PyTorch forward.  `operand_dtype` mirrors the kernel's
    matmul-operand precision (accumulation stays f32); `fold_scales=True`
    rounds the 1/sqrt(cin) / 1/h scales into the operands exactly like the
    kernel does."""
    f32 = jnp.float32

    def cast(a):
        return a.astype(operand_dtype).astype(f32)

    bs = x.shape[0]
    y = x.astype(f32)
    for w in weights:
        _, cin, _, p = w.shape
        d = y.shape[-1]
        s = 1.0 / math.sqrt(cin)
        wv = cast(w.astype(f32) * s) if fold_scales else cast(w)
        yv = cast(y).reshape(bs, 1, cin, d // p, p)
        z = (yv * wv[None]).sum(axis=(-1, -3))
        if not fold_scales:
            z = z * s
        y = jnp.maximum(z, 0.0)
    y = y.mean(axis=-1)
    hb = beta.shape[0]
    if fold_scales:
        return cast(y) @ cast(beta.astype(f32) / hb)
    return cast(y) @ cast(beta) / hb


if __name__ == "__main__":
    # Small shapes consistent with the module: d = 2**num_layers.  h is a
    # multiple of 128 so the hidden (lane) dimension is dense.
    batch, input_channels, h, out_dim, num_layers = 16, 4, 128, 8, 3
    d = 2 ** num_layers                                  # = 8

    key = jax.random.PRNGKey(0)
    kx, kp = jax.random.split(key)
    x = jax.random.normal(kx, (batch, input_channels, d), dtype=jnp.float32)
    weights, beta = init_cnn_layerwise_params(kp, input_channels, h, out_dim, num_layers)

    out = cnn_layerwise_forward(x, weights, beta, use_bf16=True)
    out = jax.block_until_ready(out)
    assert out.shape == (batch, out_dim), out.shape

    # Tight check against a reference using the kernel's operand precision and
    # scale folding...
    ref_kp = _reference_forward(x, weights, beta, operand_dtype=jnp.bfloat16,
                                fold_scales=True)
    assert jnp.allclose(out, ref_kp, atol=2e-3, rtol=2e-3), \
        float(jnp.max(jnp.abs(out - ref_kp)))
    # ...and a loose check against the full-f32 PyTorch-equivalent math.
    ref_f32 = _reference_forward(x, weights, beta, operand_dtype=jnp.float32)
    assert jnp.allclose(out, ref_f32, atol=1e-1, rtol=1e-1), \
        float(jnp.max(jnp.abs(out - ref_f32)))

    print("KERNEL_OK")
</pallas_src>

<mosaic_0001>
module attributes {stable_mosaic.version = 11 : i64} {
  func.func @_fused_cnn_kernel(%arg0: i32, %arg1: memref<32x8xbf16, #tpu.memory_space<vmem>>, %arg2: memref<8x128xbf16, #tpu.memory_space<vmem>>, %arg3: memref<256x128xbf16, #tpu.memory_space<vmem>>, %arg4: memref<256x128xbf16, #tpu.memory_space<vmem>>, %arg5: memref<128x128xbf16, #tpu.memory_space<vmem>>, %arg6: memref<8x128xf32, #tpu.memory_space<vmem>>) attributes {dimension_semantics = [#tpu.dimension_semantics<parallel>], iteration_bounds = array<i64: 2>, scalar_prefetch = 0 : i64, scratch_operands = 0 : i64, tpu.core_type = #tpu.core_type<tc>, window_params = [{transform_indices = @transform_0, window_bounds = array<i64: 32, 8>}, {pipeline_mode = #tpu.pipeline_mode<synchronous>, transform_indices = @transform_1, window_bounds = array<i64: 8, 128>}, {pipeline_mode = #tpu.pipeline_mode<synchronous>, transform_indices = @transform_2, window_bounds = array<i64: 256, 128>}, {pipeline_mode = #tpu.pipeline_mode<synchronous>, transform_indices = @transform_3, window_bounds = array<i64: 256, 128>}, {pipeline_mode = #tpu.pipeline_mode<synchronous>, transform_indices = @transform_4, window_bounds = array<i64: 128, 128>}, {transform_indices = @transform_5, window_bounds = array<i64: 8, 128>}]} {
    %c0 = arith.constant 0 : index
    %c0_0 = arith.constant 0 : index
    %0 = vector.load %arg1[%c0, %c0_0] : memref<32x8xbf16, #tpu.memory_space<vmem>>, vector<32x8xbf16>
    %c0_1 = arith.constant 0 : index
    %c0_2 = arith.constant 0 : index
    %1 = vector.load %arg2[%c0_1, %c0_2] : memref<8x128xbf16, #tpu.memory_space<vmem>>, vector<8x128xbf16>
    %cst = arith.constant dense<0.000000e+00> : vector<32x128xf32>
    %2 = tpu.matmul %0, %1, %cst {dimension_numbers = #tpu.dot_dimension_numbers<[1], [0], [0], [1], [0, 0, 1, 1], [], []>} : vector<32x8xbf16>, vector<8x128xbf16>, vector<32x128xf32> -> vector<32x128xf32>
    %cst_3 = arith.constant 0.000000e+00 : f32
    %3 = vector.broadcast %cst_3 : f32 to vector<32x128xf32>
    %4 = arith.maximumf %2, %3 : vector<32x128xf32>
    %5 = vector.extract_strided_slice %4 {offsets = [0, 0], sizes = [16, 128], strides = [1, 1]} : vector<32x128xf32> to vector<16x128xf32>
    %6 = vector.extract_strided_slice %4 {offsets = [16, 0], sizes = [16, 128], strides = [1, 1]} : vector<32x128xf32> to vector<16x128xf32>
    %7 = tpu.concatenate %5, %6 in 1 : vector<16x128xf32>, vector<16x128xf32> -> vector<16x256xf32>
    %8 = arith.truncf %7 : vector<16x256xf32> to vector<16x256xbf16>
    %c0_4 = arith.constant 0 : index
    %c0_5 = arith.constant 0 : index
    %9 = vector.load %arg3[%c0_4, %c0_5] : memref<256x128xbf16, #tpu.memory_space<vmem>>, vector<256x128xbf16>
    %cst_6 = arith.constant dense<0.000000e+00> : vector<16x128xf32>
    %10 = tpu.matmul %8, %9, %cst_6 {dimension_numbers = #tpu.dot_dimension_numbers<[1], [0], [0], [1], [0, 0, 1, 1], [], []>} : vector<16x256xbf16>, vector<256x128xbf16>, vector<16x128xf32> -> vector<16x128xf32>
    %cst_7 = arith.constant 0.000000e+00 : f32
    %11 = vector.broadcast %cst_7 : f32 to vector<16x128xf32>
    %12 = arith.maximumf %10, %11 : vector<16x128xf32>
    %13 = vector.extract_strided_slice %12 {offsets = [0, 0], sizes = [8, 128], strides = [1, 1]} : vector<16x128xf32> to vector<8x128xf32>
    %14 = vector.extract_strided_slice %12 {offsets = [8, 0], sizes = [8, 128], strides = [1, 1]} : vector<16x128xf32> to vector<8x128xf32>
    %15 = tpu.concatenate %13, %14 in 1 : vector<8x128xf32>, vector<8x128xf32> -> vector<8x256xf32>
    %16 = arith.truncf %15 : vector<8x256xf32> to vector<8x256xbf16>
    %c0_8 = arith.constant 0 : index
    %c0_9 = arith.constant 0 : index
    %17 = vector.load %arg4[%c0_8, %c0_9] : memref<256x128xbf16, #tpu.memory_space<vmem>>, vector<256x128xbf16>
    %cst_10 = arith.constant dense<0.000000e+00> : vector<8x128xf32>
    %18 = tpu.matmul %16, %17, %cst_10 {dimension_numbers = #tpu.dot_dimension_numbers<[1], [0], [0], [1], [0, 0, 1, 1], [], []>} : vector<8x256xbf16>, vector<256x128xbf16>, vector<8x128xf32> -> vector<8x128xf32>
    %cst_11 = arith.constant 0.000000e+00 : f32
    %19 = vector.broadcast %cst_11 : f32 to vector<8x128xf32>
    %20 = arith.maximumf %18, %19 : vector<8x128xf32>
    %c0_12 = arith.constant 0 : index
    %c0_13 = arith.constant 0 : index
    %21 = vector.load %arg5[%c0_12, %c0_13] : memref<128x128xbf16, #tpu.memory_space<vmem>>, vector<128x128xbf16>
    %22 = arith.truncf %20 : vector<8x128xf32> to vector<8x128xbf16>
    %cst_14 = arith.constant dense<0.000000e+00> : vector<8x128xf32>
    %23 = tpu.matmul %22, %21, %cst_14 {dimension_numbers = #tpu.dot_dimension_numbers<[1], [0], [0], [1], [0, 0, 1, 1], [], []>} : vector<8x128xbf16>, vector<128x128xbf16>, vector<8x128xf32> -> vector<8x128xf32>
    %c0_15 = arith.constant 0 : index
    %c0_16 = arith.constant 0 : index
    %24 = vector.load %arg6[%c0_15, %c0_16] : memref<8x128xf32, #tpu.memory_space<vmem>>, vector<8x128xf32>
    tpu.vector_store %arg6[%c0_15, %c0_16], %23 {strides = array<i32>} : memref<8x128xf32, #tpu.memory_space<vmem>>, vector<8x128xf32>,
    return
  }
  func.func @transform_0(%arg0: i32) -> (i32, i32) {
    %c0_i32 = arith.constant 0 : i32
    %c0_i32_0 = arith.constant 0 : i32
    return %arg0, %c0_i32 : i32, i32
  }
  func.func @transform_1(%arg0: i32) -> (i32, i32) {
    %c0_i32 = arith.constant 0 : i32
    %c0_i32_0 = arith.constant 0 : i32
    %c0_i32_1 = arith.constant 0 : i32
    return %c0_i32, %c0_i32_0 : i32, i32
  }
  func.func @transform_2(%arg0: i32) -> (i32, i32) {
    %c0_i32 = arith.constant 0 : i32
    %c0_i32_0 = arith.constant 0 : i32
    %c0_i32_1 = arith.constant 0 : i32
    return %c0_i32, %c0_i32_0 : i32, i32
  }
  func.func @transform_3(%arg0: i32) -> (i32, i32) {
    %c0_i32 = arith.constant 0 : i32
    %c0_i32_0 = arith.constant 0 : i32
    %c0_i32_1 = arith.constant 0 : i32
    return %c0_i32, %c0_i32_0 : i32, i32
  }
  func.func @transform_4(%arg0: i32) -> (i32, i32) {
    %c0_i32 = arith.constant 0 : i32
    %c0_i32_0 = arith.constant 0 : i32
    %c0_i32_1 = arith.constant 0 : i32
    return %c0_i32, %c0_i32_0 : i32, i32
  }
  func.func @transform_5(%arg0: i32) -> (i32, i32) {
    %c0_i32 = arith.constant 0 : i32
    %c0_i32_0 = arith.constant 0 : i32
    return %arg0, %c0_i32 : i32, i32
  }
}

module attributes {stable_mosaic.version = 11 : i64} {
  func.func @_fused_cnn_kernel(%arg0: i32, %arg1: memref<32x8xbf16, #tpu.memory_space<vmem>>, %arg2: memref<8x128xbf16, #tpu.memory_space<vmem>>, %arg3: memref<256x128xbf16, #tpu.memory_space<vmem>>, %arg4: memref<256x128xbf16, #tpu.memory_space<vmem>>, %arg5: memref<128x128xbf16, #tpu.memory_space<vmem>>, %arg6: memref<8x128xf32, #tpu.memory_space<vmem>>) attributes {dimension_semantics = [#tpu.dimension_semantics<parallel>], iteration_bounds = array<i64: 2>, scalar_prefetch = 0 : i64, scratch_operands = 0 : i64, tpu.core_type = #tpu.core_type<tc>, window_params = [{transform_indices = @transform_0, window_bounds = array<i64: 32, 8>}, {pipeline_mode = #tpu.pipeline_mode<synchronous>, transform_indices = @transform_1, window_bounds = array<i64: 8, 128>}, {pipeline_mode = #tpu.pipeline_mode<synchronous>, transform_indices = @transform_2, window_bounds = array<i64: 256, 128>}, {pipeline_mode = #tpu.pipeline_mode<synchronous>, transform_indices = @transform_3, window_bounds = array<i64: 256, 128>}, {pipeline_mode = #tpu.pipeline_mode<synchronous>, transform_indices = @transform_4, window_bounds = array<i64: 128, 128>}, {transform_indices = @transform_5, window_bounds = array<i64: 8, 128>}]} {
    %c0 = arith.constant 0 : index
    %c0_0 = arith.constant 0 : index
    %0 = vector.load %arg1[%c0, %c0_0] : memref<32x8xbf16, #tpu.memory_space<vmem>>, vector<32x8xbf16>
    %c0_1 = arith.constant 0 : index
    %c0_2 = arith.constant 0 : index
    %1 = vector.load %arg2[%c0_1, %c0_2] : memref<8x128xbf16, #tpu.memory_space<vmem>>, vector<8x128xbf16>
    %cst = arith.constant dense<0.000000e+00> : vector<32x128xf32>
    %2 = tpu.matmul %0, %1, %cst {dimension_numbers = #tpu.dot_dimension_numbers<[1], [0], [0], [1], [0, 0, 1, 1], [], []>} : vector<32x8xbf16>, vector<8x128xbf16>, vector<32x128xf32> -> vector<32x128xf32>
    %cst_3 = arith.constant 0.000000e+00 : f32
    %3 = vector.broadcast %cst_3 : f32 to vector<32x128xf32>
    %4 = arith.maximumf %2, %3 : vector<32x128xf32>
    %5 = vector.extract_strided_slice %4 {offsets = [0, 0], sizes = [16, 128], strides = [1, 1]} : vector<32x128xf32> to vector<16x128xf32>
    %6 = vector.extract_strided_slice %4 {offsets = [16, 0], sizes = [16, 128], strides = [1, 1]} : vector<32x128xf32> to vector<16x128xf32>
    %7 = tpu.concatenate %5, %6 in 1 : vector<16x128xf32>, vector<16x128xf32> -> vector<16x256xf32>
    %8 = arith.truncf %7 : vector<16x256xf32> to vector<16x256xbf16>
    %c0_4 = arith.constant 0 : index
    %c0_5 = arith.constant 0 : index
    %9 = vector.load %arg3[%c0_4, %c0_5] : memref<256x128xbf16, #tpu.memory_space<vmem>>, vector<256x128xbf16>
    %cst_6 = arith.constant dense<0.000000e+00> : vector<16x128xf32>
    %10 = tpu.matmul %8, %9, %cst_6 {dimension_numbers = #tpu.dot_dimension_numbers<[1], [0], [0], [1], [0, 0, 1, 1], [], []>} : vector<16x256xbf16>, vector<256x128xbf16>, vector<16x128xf32> -> vector<16x128xf32>
    %cst_7 = arith.constant 0.000000e+00 : f32
    %11 = vector.broadcast %cst_7 : f32 to vector<16x128xf32>
    %12 = arith.maximumf %10, %11 : vector<16x128xf32>
    %13 = vector.extract_strided_slice %12 {offsets = [0, 0], sizes = [8, 128], strides = [1, 1]} : vector<16x128xf32> to vector<8x128xf32>
    %14 = vector.extract_strided_slice %12 {offsets = [8, 0], sizes = [8, 128], strides = [1, 1]} : vector<16x128xf32> to vector<8x128xf32>
    %15 = tpu.concatenate %13, %14 in 1 : vector<8x128xf32>, vector<8x128xf32> -> vector<8x256xf32>
    %16 = arith.truncf %15 : vector<8x256xf32> to vector<8x256xbf16>
    %c0_8 = arith.constant 0 : index
    %c0_9 = arith.constant 0 : index
    %17 = vector.load %arg4[%c0_8, %c0_9] : memref<256x128xbf16, #tpu.memory_space<vmem>>, vector<256x128xbf16>
    %cst_10 = arith.constant dense<0.000000e+00> : vector<8x128xf32>
    %18 = tpu.matmul %16, %17, %cst_10 {dimension_numbers = #tpu.dot_dimension_numbers<[1], [0], [0], [1], [0, 0, 1, 1], [], []>} : vector<8x256xbf16>, vector<256x128xbf16>, vector<8x128xf32> -> vector<8x128xf32>
    %cst_11 = arith.constant 0.000000e+00 : f32
    %19 = vector.broadcast %cst_11 : f32 to vector<8x128xf32>
    %20 = arith.maximumf %18, %19 : vector<8x128xf32>
    %c0_12 = arith.constant 0 : index
    %c0_13 = arith.constant 0 : index
    %21 = vector.load %arg5[%c0_12, %c0_13] : memref<128x128xbf16, #tpu.memory_space<vmem>>, vector<128x128xbf16>
    %22 = arith.truncf %20 : vector<8x128xf32> to vector<8x128xbf16>
    %cst_14 = arith.constant dense<0.000000e+00> : vector<8x128xf32>
    %23 = tpu.matmul %22, %21, %cst_14 {dimension_numbers = #tpu.dot_dimension_numbers<[1], [0], [0], [1], [0, 0, 1, 1], [], []>} : vector<8x128xbf16>, vector<128x128xbf16>, vector<8x128xf32> -> vector<8x128xf32>
    %c0_15 = arith.constant 0 : index
    %c0_16 = arith.constant 0 : index
    %24 = vector.load %arg6[%c0_15, %c0_16] : memref<8x128xf32, #tpu.memory_space<vmem>>, vector<8x128xf32>
    tpu.vector_store %arg6[%c0_15, %c0_16], %23 {strides = array<i32>} : memref<8x128xf32, #tpu.memory_space<vmem>>, vector<8x128xf32>,
    return
  }
  func.func @transform_0(%arg0: i32) -> (i32, i32) {
    %c0_i32 = arith.constant 0 : i32
    %c0_i32_0 = arith.constant 0 : i32
    return %arg0, %c0_i32 : i32, i32
  }
  func.func @transform_1(%arg0: i32) -> (i32, i32) {
    %c0_i32 = arith.constant 0 : i32
    %c0_i32_0 = arith.constant 0 : i32
    %c0_i32_1 = arith.constant 0 : i32
    return %c0_i32, %c0_i32_0 : i32, i32
  }
  func.func @transform_2(%arg0: i32) -> (i32, i32) {
    %c0_i32 = arith.constant 0 : i32
    %c0_i32_0 = arith.constant 0 : i32
    %c0_i32_1 = arith.constant 0 : i32
    return %c0_i32, %c0_i32_0 : i32, i32
  }
  func.func @transform_3(%arg0: i32) -> (i32, i32) {
    %c0_i32 = arith.constant 0 : i32
    %c0_i32_0 = arith.constant 0 : i32
    %c0_i32_1 = arith.constant 0 : i32
    return %c0_i32, %c0_i32_0 : i32, i32
  }
  func.func @transform_4(%arg0: i32) -> (i32, i32) {
    %c0_i32 = arith.constant 0 : i32
    %c0_i32_0 = arith.constant 0 : i32
    %c0_i32_1 = arith.constant 0 : i32
    return %c0_i32, %c0_i32_0 : i32, i32
  }
  func.func @transform_5(%arg0: i32) -> (i32, i32) {
    %c0_i32 = arith.constant 0 : i32
    %c0_i32_0 = arith.constant 0 : i32
    return %arg0, %c0_i32 : i32, i32
  }
}

</mosaic_0001>

<llo_original>
// kernel: tpu_custom_call.1
$region0: #{tpu_custom_call.1}
  #allocation0 [shape = 'u32[]', space=smem, size = 0x4, offset = 0x4, fixed_abs, tag = 'smem constant byte address 0x4 - core index']
  #allocation1 [shape = 'u32[72,128]{1,0:T(1,128)}', space=vmem, size = 0x9000, scoped, tag = 'internal scratch']
  %s0 = inlined_call_operand.vmem [shape: bf16[64,8], index: 0, kind: input, shape index: {}]
  %s1 = inlined_call_operand.vmem [shape: bf16[8,128], index: 1, kind: input, shape index: {}]
  %s2 = inlined_call_operand.hbm [shape: bf16[256,128], index: 2, kind: input, shape index: {}]
  %s3 = inlined_call_operand.hbm [shape: bf16[256,128], index: 3, kind: input, shape index: {}]
  %s4 = inlined_call_operand.hbm [shape: bf16[128,128], index: 4, kind: input, shape index: {}]
  %s5 = inlined_call_operand.hbm [shape: f32[16,128], index: 5, kind: output, shape index: {}]
  %s6 = sld [smem:[#allocation0]]
  $region65: #{tpu_custom_call.1} parent=0
    _
  %s8 = ssub.s32 1, %s6
  %s9 = scalar_select 0, %s8, %s6
  $region1: #{tpu_custom_call.1} parent=0
    #allocation2 [shape = 'u8[65536]{0}', space=vmem, size = 0x10000, scoped, tag = 'input window, operand 2, single buffered']
    #allocation3 [shape = 's32[2]{0}', space=sflag, size = 0x8, scoped, tag = 'scoped memory for tpu_custom_call.1']
    #allocation4 [shape = 's32[2]{0}', space=sflag, size = 0x8, scoped, tag = 'scoped memory for tpu_custom_call.1']
    #allocation5 [shape = 'u8[65536]{0}', space=vmem, size = 0x10000, scoped, tag = 'input window, operand 3, single buffered']
    #allocation6 [shape = 's32[1]{0}', space=sflag, size = 0x4, scoped, tag = 'scoped memory for tpu_custom_call.1']
    #allocation7 [shape = 'u8[32768]{0}', space=vmem, size = 0x8000, scoped, tag = 'input window, operand 4, single buffered']
    #allocation8 [shape = 'u8[8192]{0}', space=vmem, size = 0x2000, scoped, tag = 'output window, operand 0']
    %10 = vsyncpa [#allocation3], 0
    %11 = vsyncpa [#allocation6], 0
    %12 = vsyncpa [#allocation4], 0
    %s13 = scalar_lea.sflag [#allocation4], 1
    %14 = vsyncpa %s13, 0
    loop: start=0, step=1, limit=4
    $region2: #{tpu_custom_call.1} parent=1 // loop_pre_header
      _
    $region3: #{tpu_custom_call.1} parent=1 // loop_header
      %s16 = sphi 0, %s20
      %p17 = scmp.ge.s32.totalorder %s16, 4
      %s26 = sphi 0, %s28
      %s29 = sphi 0, %s26
      %s30 = sphi 0, %s29
      %s46 = sphi 0, %s30
      %s50 = sphi 0, %s50
      %s52 = sphi 0, %s50
      %s53 = sphi 0, %s52
      %s67 = sphi 0, %s53
      %s71 = sphi 0, %s71
      %s73 = sphi 0, %s71
      %s74 = sphi 0, %s73
      %s88 = sphi 0, %s74
      %s92 = sphi 0, %s92
      %s94 = sphi 0, %s92
      %s95 = sphi 0, %s94
      %s109 = sphi 0, %s95
      %s113 = sphi 0, %s113
      %s115 = sphi 0, %s113
      %s116 = sphi 0, %s115
      %s130 = sphi 0, %s116
      %s136 = sphi 0, %s138
      %s139 = sphi 0, %s136
      %s140 = sphi 0, %s139
      %s156 = sphi 0, %s140
    $region4: #{tpu_custom_call.1} parent=1 // loop_header_branch
      %19 = sbr.rel (%p17) target = $region8
    $region5: #{tpu_custom_call.1} parent=1 // loop_body
      %s21 = ssub.s32 %s16, 1
      %s22 = ssub.s32 %s16, 2
      %s23 = sadd.s32 %s16, 1
      %s24 = ssub.s32 %s16, %s23
      %p25 = scmp.eq.s32.totalorder %s24, 0
      %s27 = sadd.s32 %s26, 1
      %s28 = scalar_select %p25, %s26, %s27
      %p31 = pneg %p25
      %p32 = scmp.eq.s32.totalorder %s16, 1
      %p33 = por %p31, %p32
      %p34 = scmp.ne.s32.totalorder %s26, %s29
      %p35 = scmp.eq.s32.totalorder %s16, 0
      %p36 = por %p34, %p35
      %p37 = scmp.ne.s32.totalorder %s26, %s29
      %p38 = scmp.eq.s32.totalorder %s21, 1
      %p39 = por %p37, %p38
      %p40 = scmp.ne.s32.totalorder %s29, %s30
      %p41 = scmp.eq.s32.totalorder %s21, 0
      %p42 = por %p40, %p41
      %p43 = scmp.ne.s32.totalorder %s29, %s30
      %p44 = scmp.eq.s32.totalorder %s22, 1
      %p45 = por %p43, %p44
      %p47 = scmp.ne.s32.totalorder %s30, %s46
      %p48 = scmp.eq.s32.totalorder %s22, 0
      %p49 = por %p47, %p48
      %s51 = sadd.s32 %s50, 1
      %p54 = scmp.eq.s32.totalorder %s16, 1
      %p55 = scmp.ne.s32.totalorder %s50, %s52
      %p56 = scmp.eq.s32.totalorder %s16, 0
      %p57 = por %p55, %p56
      %p58 = scmp.ne.s32.totalorder %s50, %s52
      %p59 = scmp.eq.s32.totalorder %s21, 1
      %p60 = por %p58, %p59
      %p61 = scmp.ne.s32.totalorder %s52, %s53
      %p62 = scmp.eq.s32.totalorder %s21, 0
      %p63 = por %p61, %p62
      %p64 = scmp.ne.s32.totalorder %s52, %s53
      %p65 = scmp.eq.s32.totalorder %s22, 1
      %p66 = por %p64, %p65
      %p68 = scmp.ne.s32.totalorder %s53, %s67
      %p69 = scmp.eq.s32.totalorder %s22, 0
      %p70 = por %p68, %p69
      %s72 = sadd.s32 %s71, 1
      %p75 = scmp.eq.s32.totalorder %s16, 1
      %p76 = scmp.ne.s32.totalorder %s71, %s73
      %p77 = scmp.eq.s32.totalorder %s16, 0
      %p78 = por %p76, %p77
      %p79 = scmp.ne.s32.totalorder %s71, %s73
      %p80 = scmp.eq.s32.totalorder %s21, 1
      %p81 = por %p79, %p80
      %p82 = scmp.ne.s32.totalorder %s73, %s74
      %p83 = scmp.eq.s32.totalorder %s21, 0
      %p84 = por %p82, %p83
      %p85 = scmp.ne.s32.totalorder %s73, %s74
      %p86 = scmp.eq.s32.totalorder %s22, 1
      %p87 = por %p85, %p86
      %p89 = scmp.ne.s32.totalorder %s74, %s88
      %p90 = scmp.eq.s32.totalorder %s22, 0
      %p91 = por %p89, %p90
      %s93 = sadd.s32 %s92, 1
      %p96 = scmp.eq.s32.totalorder %s16, 1
      %p97 = scmp.ne.s32.totalorder %s92, %s94
      %p98 = scmp.eq.s32.totalorder %s16, 0
      %p99 = por %p97, %p98
      %p100 = scmp.ne.s32.totalorder %s92, %s94
      %p101 = scmp.eq.s32.totalorder %s21, 1
      %p102 = por %p100, %p101
      %p103 = scmp.ne.s32.totalorder %s94, %s95
      %p104 = scmp.eq.s32.totalorder %s21, 0
      %p105 = por %p103, %p104
      %p106 = scmp.ne.s32.totalorder %s94, %s95
      %p107 = scmp.eq.s32.totalorder %s22, 1
      %p108 = por %p106, %p107
      %p110 = scmp.ne.s32.totalorder %s95, %s109
      %p111 = scmp.eq.s32.totalorder %s22, 0
      %p112 = por %p110, %p111
      %s114 = sadd.s32 %s113, 1
      %p117 = scmp.eq.s32.totalorder %s16, 1
      %p118 = scmp.ne.s32.totalorder %s113, %s115
      %p119 = scmp.eq.s32.totalorder %s16, 0
      %p120 = por %p118, %p119
      %p121 = scmp.ne.s32.totalorder %s113, %s115
      %p122 = scmp.eq.s32.totalorder %s21, 1
      %p123 = por %p121, %p122
      %p124 = scmp.ne.s32.totalorder %s115, %s116
      %p125 = scmp.eq.s32.totalorder %s21, 0
      %p126 = por %p124, %p125
      %p127 = scmp.ne.s32.totalorder %s115, %s116
      %p128 = scmp.eq.s32.totalorder %s22, 1
      %p129 = por %p127, %p128
      %p131 = scmp.ne.s32.totalorder %s116, %s130
      %p132 = scmp.eq.s32.totalorder %s22, 0
      %p133 = por %p131, %p132
      %s134 = ssub.s32 %s16, %s23
      %p135 = scmp.eq.s32.totalorder %s134, 0
      %s137 = sadd.s32 %s136, 1
      %s138 = scalar_select %p135, %s136, %s137
      %p141 = pneg %p135
      %p142 = scmp.eq.s32.totalorder %s16, 1
      %p143 = por %p141, %p142
      %p144 = scmp.ne.s32.totalorder %s136, %s139
      %p145 = scmp.eq.s32.totalorder %s16, 0
      %p146 = por %p144, %p145
      %p147 = scmp.ne.s32.totalorder %s136, %s139
      %p148 = scmp.eq.s32.totalorder %s21, 1
      %p149 = por %p147, %p148
      %p150 = scmp.ne.s32.totalorder %s139, %s140
      %p151 = scmp.eq.s32.totalorder %s21, 0
      %p152 = por %p150, %p151
      %p153 = scmp.ne.s32.totalorder %s139, %s140
      %p154 = scmp.eq.s32.totalorder %s22, 1
      %p155 = por %p153, %p154
      %p157 = scmp.ne.s32.totalorder %s140, %s156
      %p158 = scmp.eq.s32.totalorder %s22, 0
      %p159 = por %p157, %p158
      %p160 = scmp.le.s32.totalorder 1, %s16
      %p161 = scmp.lt.s32.totalorder %s16, 3
      %p162 = pnand %p160, %p161
      %p163 = pneg %p162
      // Predicated region
      $region9: #{tpu_custom_call.1} parent=5 // pred_check
        _
      $region10: #{tpu_custom_call.1} parent=5 // pred_check_branch
        %165 = sbr.rel (%p162) target = $region12
      $region11: #{tpu_custom_call.1} parent=5 // pred_region
        %s166 = ssub.s32 %s16, 1
        // Predicated region
        $region13: #{tpu_custom_call.1} parent=11 // pred_check
          %p167 = pneg %p63
        $region14: #{tpu_custom_call.1} parent=11 // pred_check_branch
          %169 = sbr.rel (%p167) target = $region16
        $region15: #{tpu_custom_call.1} parent=11 // pred_region
          _
        $region16: #{tpu_custom_call.1} parent=11 // pred_fallthru
          _
        // Predicated region
        $region17: #{tpu_custom_call.1} parent=11 // pred_check
          %p170 = pneg %p84
        $region18: #{tpu_custom_call.1} parent=11 // pred_check_branch
          %172 = sbr.rel (%p170) target = $region20
        $region19: #{tpu_custom_call.1} parent=11 // pred_region
          %174 = vsyncadd [#allocation3], 0
          %s175 = sshll.u32 %s2, 4
          %s176 = int_to_ptr.hbm [resolvable:$true] %s175
          %s177 = sshll.u32 [#allocation2], 4
          %s178 = int_to_ptr.vmem [resolvable:$true] %s177
          %183 = dma.hbm_to_vmem [thread:$0]  %s176, 2048, %s178, [#allocation3], 64, 64, 4
        $region20: #{tpu_custom_call.1} parent=11 // pred_fallthru
          _
        // Predicated region
        $region21: #{tpu_custom_call.1} parent=11 // pred_check
          %p184 = pneg %p105
        $region22: #{tpu_custom_call.1} parent=11 // pred_check_branch
          %186 = sbr.rel (%p184) target = $region24
        $region23: #{tpu_custom_call.1} parent=11 // pred_region
          %188 = vsyncadd [#allocation6], 0
          %s189 = sshll.u32 %s3, 4
          %s190 = int_to_ptr.hbm [resolvable:$true] %s189
          %s191 = sshll.u32 [#allocation5], 4
          %s192 = int_to_ptr.vmem [resolvable:$true] %s191
          %197 = dma.hbm_to_vmem [thread:$0]  %s190, 2048, %s192, [#allocation6], 64, 64, 4
        $region24: #{tpu_custom_call.1} parent=11 // pred_fallthru
          _
        // Predicated region
        $region25: #{tpu_custom_call.1} parent=11 // pred_check
          %p198 = pneg %p126
        $region26: #{tpu_custom_call.1} parent=11 // pred_check_branch
          %200 = sbr.rel (%p198) target = $region28
        $region27: #{tpu_custom_call.1} parent=11 // pred_region
          %202 = vsyncadd [#allocation6], 0
          %s203 = sshll.u32 %s4, 4
          %s204 = int_to_ptr.hbm [resolvable:$true] %s203
          %s205 = sshll.u32 [#allocation7], 4
          %s206 = int_to_ptr.vmem [resolvable:$true] %s205
          %211 = dma.hbm_to_vmem [thread:$0]  %s204, 1024, %s206, [#allocation6], 64, 64, 4
        $region28: #{tpu_custom_call.1} parent=11 // pred_fallthru
          _
      $region12: #{tpu_custom_call.1} parent=5 // pred_fallthru
        _
      %p212 = scmp.lt.s32.totalorder %s16, 2
      // Predicated region
      $region29: #{tpu_custom_call.1} parent=5 // pred_check
        %p213 = pneg %p212
      $region30: #{tpu_custom_call.1} parent=5 // pred_check_branch
        %215 = sbr.rel (%p213) target = $region32
      $region31: #{tpu_custom_call.1} parent=5 // pred_region
        // Predicated region
        $region33: #{tpu_custom_call.1} parent=31 // pred_check
          %p216 = pneg %p36
        $region34: #{tpu_custom_call.1} parent=31 // pred_check_branch
          %218 = sbr.rel (%p216) target = $region36
        $region35: #{tpu_custom_call.1} parent=31 // pred_region
          %s219 = smul.u32 4, %s16
          %p220 = scmp.lt.s32.totalorder %s219, 7
          %s221 = scalar_select %p220, %s219, 7
          %s222 = smul.addr %s221, 4
          %s223 = scalar_lea.vmem %s0, %s222
          %s224 = smul.u32 4, %s16
        $region36: #{tpu_custom_call.1} parent=31 // pred_fallthru
          _
      $region32: #{tpu_custom_call.1} parent=5 // pred_fallthru
        _
      %p225 = scmp.le.s32.totalorder 1, %s16
      %p226 = scmp.lt.s32.totalorder %s16, 3
      %p227 = pnand %p225, %p226
      %p228 = pneg %p227
      // Predicated region
      $region37: #{tpu_custom_call.1} parent=5 // pred_check
        _
      $region38: #{tpu_custom_call.1} parent=5 // pred_check_branch
        %230 = sbr.rel (%p227) target = $region40
      $region39: #{tpu_custom_call.1} parent=5 // pred_region
        %s231 = ssub.s32 %s16, 1
        // Predicated region
        $region41: #{tpu_custom_call.1} parent=39 // pred_check
          %p232 = pneg %p84
        $region42: #{tpu_custom_call.1} parent=39 // pred_check_branch
          %234 = sbr.rel (%p232) target = $region44
        $region43: #{tpu_custom_call.1} parent=39 // pred_region
          %236 = dma.done [#allocation3], 2048
        $region44: #{tpu_custom_call.1} parent=39 // pred_fallthru
          _
        // Predicated region
        $region45: #{tpu_custom_call.1} parent=39 // pred_check
          %p237 = pneg %p105
        $region46: #{tpu_custom_call.1} parent=39 // pred_check_branch
          %239 = sbr.rel (%p237) target = $region48
        $region47: #{tpu_custom_call.1} parent=39 // pred_region
          %241 = dma.done [#allocation6], 2048
        $region48: #{tpu_custom_call.1} parent=39 // pred_fallthru
          _
        // Predicated region
        $region49: #{tpu_custom_call.1} parent=39 // pred_check
          %p242 = pneg %p126
        $region50: #{tpu_custom_call.1} parent=39 // pred_check_branch
          %244 = sbr.rel (%p242) target = $region52
        $region51: #{tpu_custom_call.1} parent=39 // pred_region
          %246 = dma.done [#allocation6], 1024
        $region52: #{tpu_custom_call.1} parent=39 // pred_fallthru
          _
        %s247 = smul.u32 4, %s21
        %p248 = scmp.lt.s32.totalorder %s247, 7
        %s249 = scalar_select %p248, %s247, 7
        %s250 = smul.addr %s249, 4
        %s251 = scalar_lea.vmem %s0, %s250
        %p252 = pneg %p42
        %p253 = pneg %p39
        %p254 = pneg %p63
        %p255 = pneg %p60
        %p256 = pneg %p84
        %p257 = pneg %p81
        %p258 = pneg %p105
        %p259 = pneg %p102
        %p260 = pneg %p126
        %p261 = pneg %p123
        %p262 = pneg %p152
        %p263 = pneg %p149
        %s264 = sand.u32 %s139, 1
        %s265 = scalar_lea.sflag [#allocation4], %s264
        %s266 = sand.u32 %s139, 1
        %s267 = smul.addr %s266, 8
        %s268 = scalar_lea.vmem [#allocation8], %s267
        %s269 = smul.u32 4, %s21
        %p270 = scmp.lt.s32.totalorder %s269, 7
        %s271 = scalar_select %p270, %s269, 7
        %s272 = smul.addr %s271, 4
        %s273 = scalar_lea.vmem %s0, %s272
        %s274 = smul.u32 4, %s21
        %v276 = vld [vmem:[%s273] sm:$0xf]
        %v277 = vld [vmem:[%s273 + $0x4] sm:$0xf]
        %v278 = vld [vmem:[%s273 + $0x8] sm:$0xf]
        %v279 = vld [vmem:[%s273 + $0xc] sm:$0xf]
        %v280 = vld [vmem:[%s1] sm:$0xf]
        %v285 = vunpack.c.l.b16 %v276
        %v286 = vunpack.c.l.b16 %v277
        %v287 = vunpack.c.l.b16 %v278
        %v288 = vunpack.c.l.b16 %v279
        %v289 = vpack.c.b16 %v286, %v285
        %v290 = vpack.c.b16 %v288, %v287
        %vm291 = vcmask 64512
        %v293 = vsel %vm291, %v289, 0
        %v296 = vsel %vm291, %v290, 0
        %vm298 = vcmask 1043456
        %v300 = vsel %vm298, %v280, 0
        %302 = vmatpush.bf16.msra.mxu0 0
        %303 = vmatpush.bf16.msra.mxu0 0
        %304 = vmatpush.bf16.msra.mxu0 0
        %305 = vmatpush.bf16.msra.mxu0 0
        %306 = vmatpush.bf16.msra.mxu0 0
        %307 = vmatpush.bf16.msra.mxu0 0
        %308 = vmatpush.bf16.msra.mxu0 0
        %309 = vmatpush.bf16.msra.mxu0 %v300
        %310 = vmatmul.bf16.gmra.mxu0 %v293
        %v311 = vpop.f32.mrf.mxu0
        %v312 = vadd.f32 0.0, %v311
        %v313 = vpop.f32.mrf.mxu0
        %v314 = vadd.f32 0.0, %v313
        %315 = vmatmul.bf16.gmra.mxu0 %v296
        %v316 = vpop.f32.mrf.mxu0
        %v317 = vadd.f32 0.0, %v316
        %v318 = vpop.f32.mrf.mxu0
        %v319 = vadd.f32 0.0, %v318
        %320 = vdwg.mxu0
        %v321 = vmax.f32 %v312, 0.0
        %v322 = vmax.f32 %v314, 0.0
        %v323 = vmax.f32 %v317, 0.0
        %v324 = vmax.f32 %v319, 0.0
        %v325 = vpack.c.bf16 %v322, %v321
        %v326 = vpack.c.bf16 %v324, %v323
        %v327 = vld [vmem:[#allocation2] sm:$0xf]
        %v328 = vld [vmem:[#allocation2 + $0x4] sm:$0xf]
        %v329 = vld [vmem:[#allocation2 + $0x8] sm:$0xf]
        %v330 = vld [vmem:[#allocation2 + $0xc] sm:$0xf]
        %v331 = vld [vmem:[#allocation2 + $0x10] sm:$0xf]
        %v332 = vld [vmem:[#allocation2 + $0x14] sm:$0xf]
        %v333 = vld [vmem:[#allocation2 + $0x18] sm:$0xf]
        %v334 = vld [vmem:[#allocation2 + $0x1c] sm:$0xf]
        %v335 = vld [vmem:[#allocation2 + $0x20] sm:$0xf]
        %v336 = vld [vmem:[#allocation2 + $0x24] sm:$0xf]
        %v337 = vld [vmem:[#allocation2 + $0x28] sm:$0xf]
        %v338 = vld [vmem:[#allocation2 + $0x2c] sm:$0xf]
        %v339 = vld [vmem:[#allocation2 + $0x30] sm:$0xf]
        %v340 = vld [vmem:[#allocation2 + $0x34] sm:$0xf]
        %v341 = vld [vmem:[#allocation2 + $0x38] sm:$0xf]
        %v342 = vld [vmem:[#allocation2 + $0x3c] sm:$0xf]
        %v343 = vld [vmem:[#allocation2 + $0x40] sm:$0xf]
        %v344 = vld [vmem:[#allocation2 + $0x44] sm:$0xf]
        %v345 = vld [vmem:[#allocation2 + $0x48] sm:$0xf]
        %v346 = vld [vmem:[#allocation2 + $0x4c] sm:$0xf]
        %v347 = vld [vmem:[#allocation2 + $0x50] sm:$0xf]
        %v348 = vld [vmem:[#allocation2 + $0x54] sm:$0xf]
        %v349 = vld [vmem:[#allocation2 + $0x58] sm:$0xf]
        %v350 = vld [vmem:[#allocation2 + $0x5c] sm:$0xf]
        %v351 = vld [vmem:[#allocation2 + $0x60] sm:$0xf]
        %v352 = vld [vmem:[#allocation2 + $0x64] sm:$0xf]
        %v353 = vld [vmem:[#allocation2 + $0x68] sm:$0xf]
        %v354 = vld [vmem:[#allocation2 + $0x6c] sm:$0xf]
        %v355 = vld [vmem:[#allocation2 + $0x70] sm:$0xf]
        %v356 = vld [vmem:[#allocation2 + $0x74] sm:$0xf]
        %v357 = vld [vmem:[#allocation2 + $0x78] sm:$0xf]
        %v358 = vld [vmem:[#allocation2 + $0x7c] sm:$0xf]
        %v391 = vunpack.c.l.b16 %v327
        %v392 = vunpack.c.l.b16 %v328
        %v393 = vunpack.c.l.b16 %v329
        %v394 = vunpack.c.l.b16 %v330
        %v395 = vunpack.c.l.b16 %v331
        %v396 = vunpack.c.l.b16 %v332
        %v397 = vunpack.c.l.b16 %v333
        %v398 = vunpack.c.l.b16 %v334
        %v399 = vunpack.c.l.b16 %v335
        %v400 = vunpack.c.l.b16 %v336
        %v401 = vunpack.c.l.b16 %v337
        %v402 = vunpack.c.l.b16 %v338
        %v403 = vunpack.c.l.b16 %v339
        %v404 = vunpack.c.l.b16 %v340
        %v405 = vunpack.c.l.b16 %v341
        %v406 = vunpack.c.l.b16 %v342
        %v407 = vunpack.c.l.b16 %v343
        %v408 = vunpack.c.l.b16 %v344
        %v409 = vunpack.c.l.b16 %v345
        %v410 = vunpack.c.l.b16 %v346
        %v411 = vunpack.c.l.b16 %v347
        %v412 = vunpack.c.l.b16 %v348
        %v413 = vunpack.c.l.b16 %v349
        %v414 = vunpack.c.l.b16 %v350
        %v415 = vunpack.c.l.b16 %v351
        %v416 = vunpack.c.l.b16 %v352
        %v417 = vunpack.c.l.b16 %v353
        %v418 = vunpack.c.l.b16 %v354
        %v419 = vunpack.c.l.b16 %v355
        %v420 = vunpack.c.l.b16 %v356
        %v421 = vunpack.c.l.b16 %v357
        %v422 = vunpack.c.l.b16 %v358
        %v423 = vpack.c.b16 %v392, %v391
        %v424 = vpack.c.b16 %v394, %v393
        %v425 = vpack.c.b16 %v396, %v395
        %v426 = vpack.c.b16 %v398, %v397
        %v427 = vpack.c.b16 %v400, %v399
        %v428 = vpack.c.b16 %v402, %v401
        %v429 = vpack.c.b16 %v404, %v403
        %v430 = vpack.c.b16 %v406, %v405
        %v431 = vpack.c.b16 %v408, %v407
        %v432 = vpack.c.b16 %v410, %v409
        %v433 = vpack.c.b16 %v412, %v411
        %v434 = vpack.c.b16 %v414, %v413
        %v435 = vpack.c.b16 %v416, %v415
        %v436 = vpack.c.b16 %v418, %v417
        %v437 = vpack.c.b16 %v420, %v419
        %v438 = vpack.c.b16 %v422, %v421
        %455 = vmatpush.bf16.msra.mxu0 %v430
        %456 = vmatpush.bf16.msra.mxu0 %v429
        %457 = vmatpush.bf16.msra.mxu0 %v428
        %458 = vmatpush.bf16.msra.mxu0 %v427
        %459 = vmatpush.bf16.msra.mxu0 %v426
        %460 = vmatpush.bf16.msra.mxu0 %v425
        %461 = vmatpush.bf16.msra.mxu0 %v424
        %462 = vmatpush.bf16.msra.mxu0 %v423
        %463 = vmatmul.bf16.gmra.mxu0 %v325
        %v464 = vpop.f32.mrf.mxu0
        %v465 = vadd.f32 0.0, %v464
        %v466 = vpop.f32.mrf.mxu0
        %v467 = vadd.f32 0.0, %v466
        %468 = vdwg.mxu0
        %469 = vmatpush.bf16.msra.mxu0 %v438
        %470 = vmatpush.bf16.msra.mxu0 %v437
        %471 = vmatpush.bf16.msra.mxu0 %v436
        %472 = vmatpush.bf16.msra.mxu0 %v435
        %473 = vmatpush.bf16.msra.mxu0 %v434
        %474 = vmatpush.bf16.msra.mxu0 %v433
        %475 = vmatpush.bf16.msra.mxu0 %v432
        %476 = vmatpush.bf16.msra.mxu0 %v431
        %477 = vmatmul.bf16.gmra.mxu0 %v326
        %v478 = vpop.f32.mrf.mxu0
        %v479 = vadd.f32 %v465, %v478
        %v480 = vpop.f32.mrf.mxu0
        %v481 = vadd.f32 %v467, %v480
        %482 = vdwg.mxu0
        %v483 = vmax.f32 %v479, 0.0
        %v484 = vmax.f32 %v481, 0.0
        %v485 = vpack.c.bf16 %v483, %v483
        %v486 = vpack.c.bf16 %v484, %v484
        %v487 = vld [vmem:[#allocation5] sm:$0xf]
        %v488 = vld [vmem:[#allocation5 + $0x4] sm:$0xf]
        %v489 = vld [vmem:[#allocation5 + $0x8] sm:$0xf]
        %v490 = vld [vmem:[#allocation5 + $0xc] sm:$0xf]
        %v491 = vld [vmem:[#allocation5 + $0x10] sm:$0xf]
        %v492 = vld [vmem:[#allocation5 + $0x14] sm:$0xf]
        %v493 = vld [vmem:[#allocation5 + $0x18] sm:$0xf]
        %v494 = vld [vmem:[#allocation5 + $0x1c] sm:$0xf]
        %v495 = vld [vmem:[#allocation5 + $0x20] sm:$0xf]
        %v496 = vld [vmem:[#allocation5 + $0x24] sm:$0xf]
        %v497 = vld [vmem:[#allocation5 + $0x28] sm:$0xf]
        %v498 = vld [vmem:[#allocation5 + $0x2c] sm:$0xf]
        %v499 = vld [vmem:[#allocation5 + $0x30] sm:$0xf]
        %v500 = vld [vmem:[#allocation5 + $0x34] sm:$0xf]
        %v501 = vld [vmem:[#allocation5 + $0x38] sm:$0xf]
        %v502 = vld [vmem:[#allocation5 + $0x3c] sm:$0xf]
        %v503 = vld [vmem:[#allocation5 + $0x40] sm:$0xf]
        %v504 = vld [vmem:[#allocation5 + $0x44] sm:$0xf]
        %v505 = vld [vmem:[#allocation5 + $0x48] sm:$0xf]
        %v506 = vld [vmem:[#allocation5 + $0x4c] sm:$0xf]
        %v507 = vld [vmem:[#allocation5 + $0x50] sm:$0xf]
        %v508 = vld [vmem:[#allocation5 + $0x54] sm:$0xf]
        %v509 = vld [vmem:[#allocation5 + $0x58] sm:$0xf]
        %v510 = vld [vmem:[#allocation5 + $0x5c] sm:$0xf]
        %v511 = vld [vmem:[#allocation5 + $0x60] sm:$0xf]
        %v512 = vld [vmem:[#allocation5 + $0x64] sm:$0xf]
        %v513 = vld [vmem:[#allocation5 + $0x68] sm:$0xf]
        %v514 = vld [vmem:[#allocation5 + $0x6c] sm:$0xf]
        %v515 = vld [vmem:[#allocation5 + $0x70] sm:$0xf]
        %v516 = vld [vmem:[#allocation5 + $0x74] sm:$0xf]
        %v517 = vld [vmem:[#allocation5 + $0x78] sm:$0xf]
        %v518 = vld [vmem:[#allocation5 + $0x7c] sm:$0xf]
        %v551 = vunpack.c.l.b16 %v487
        %v552 = vunpack.c.l.b16 %v488
        %v553 = vunpack.c.l.b16 %v489
        %v554 = vunpack.c.l.b16 %v490
        %v555 = vunpack.c.l.b16 %v491
        %v556 = vunpack.c.l.b16 %v492
        %v557 = vunpack.c.l.b16 %v493
        %v558 = vunpack.c.l.b16 %v494
        %v559 = vunpack.c.l.b16 %v495
        %v560 = vunpack.c.l.b16 %v496
        %v561 = vunpack.c.l.b16 %v497
        %v562 = vunpack.c.l.b16 %v498
        %v563 = vunpack.c.l.b16 %v499
        %v564 = vunpack.c.l.b16 %v500
        %v565 = vunpack.c.l.b16 %v501
        %v566 = vunpack.c.l.b16 %v502
        %v567 = vunpack.c.l.b16 %v503
        %v568 = vunpack.c.l.b16 %v504
        %v569 = vunpack.c.l.b16 %v505
        %v570 = vunpack.c.l.b16 %v506
        %v571 = vunpack.c.l.b16 %v507
        %v572 = vunpack.c.l.b16 %v508
        %v573 = vunpack.c.l.b16 %v509
        %v574 = vunpack.c.l.b16 %v510
        %v575 = vunpack.c.l.b16 %v511
        %v576 = vunpack.c.l.b16 %v512
        %v577 = vunpack.c.l.b16 %v513
        %v578 = vunpack.c.l.b16 %v514
        %v579 = vunpack.c.l.b16 %v515
        %v580 = vunpack.c.l.b16 %v516
        %v581 = vunpack.c.l.b16 %v517
        %v582 = vunpack.c.l.b16 %v518
        %v583 = vpack.c.b16 %v552, %v551
        %v584 = vpack.c.b16 %v554, %v553
        %v585 = vpack.c.b16 %v556, %v555
        %v586 = vpack.c.b16 %v558, %v557
        %v587 = vpack.c.b16 %v560, %v559
        %v588 = vpack.c.b16 %v562, %v561
        %v589 = vpack.c.b16 %v564, %v563
        %v590 = vpack.c.b16 %v566, %v565
        %v591 = vpack.c.b16 %v568, %v567
        %v592 = vpack.c.b16 %v570, %v569
        %v593 = vpack.c.b16 %v572, %v571
        %v594 = vpack.c.b16 %v574, %v573
        %v595 = vpack.c.b16 %v576, %v575
        %v596 = vpack.c.b16 %v578, %v577
        %v597 = vpack.c.b16 %v580, %v579
        %v598 = vpack.c.b16 %v582, %v581
        %615 = vmatpush.bf16.msra.mxu0 %v590
        %616 = vmatpush.bf16.msra.mxu0 %v589
        %617 = vmatpush.bf16.msra.mxu0 %v588
        %618 = vmatpush.bf16.msra.mxu0 %v587
        %619 = vmatpush.bf16.msra.mxu0 %v586
        %620 = vmatpush.bf16.msra.mxu0 %v585
        %621 = vmatpush.bf16.msra.mxu0 %v584
        %622 = vmatpush.bf16.msra.mxu0 %v583
        %623 = vmatmul.bf16.gmra.mxu0 %v485
        %v624 = vpop.f32.mrf.mxu0
        %v625 = vadd.f32 0.0, %v624
        %v626 = vpop.f32.mrf.mxu0
        %627 = vdwg.mxu0
        %628 = vmatpush.bf16.msra.mxu0 %v598
        %629 = vmatpush.bf16.msra.mxu0 %v597
        %630 = vmatpush.bf16.msra.mxu0 %v596
        %631 = vmatpush.bf16.msra.mxu0 %v595
        %632 = vmatpush.bf16.msra.mxu0 %v594
        %633 = vmatpush.bf16.msra.mxu0 %v593
        %634 = vmatpush.bf16.msra.mxu0 %v592
        %635 = vmatpush.bf16.msra.mxu0 %v591
        %636 = vmatmul.bf16.gmra.mxu0 %v486
        %v637 = vpop.f32.mrf.mxu0
        %v638 = vadd.f32 %v625, %v637
        %v639 = vpop.f32.mrf.mxu0
        %640 = vdwg.mxu0
        %v641 = vmax.f32 %v638, 0.0
        %v642 = vld [vmem:[#allocation7] sm:$0xf]
        %v643 = vld [vmem:[#allocation7 + $0x4] sm:$0xf]
        %v644 = vld [vmem:[#allocation7 + $0x8] sm:$0xf]
        %v645 = vld [vmem:[#allocation7 + $0xc] sm:$0xf]
        %v646 = vld [vmem:[#allocation7 + $0x10] sm:$0xf]
        %v647 = vld [vmem:[#allocation7 + $0x14] sm:$0xf]
        %v648 = vld [vmem:[#allocation7 + $0x18] sm:$0xf]
        %v649 = vld [vmem:[#allocation7 + $0x1c] sm:$0xf]
        %v650 = vld [vmem:[#allocation7 + $0x20] sm:$0xf]
        %v651 = vld [vmem:[#allocation7 + $0x24] sm:$0xf]
        %v652 = vld [vmem:[#allocation7 + $0x28] sm:$0xf]
        %v653 = vld [vmem:[#allocation7 + $0x2c] sm:$0xf]
        %v654 = vld [vmem:[#allocation7 + $0x30] sm:$0xf]
        %v655 = vld [vmem:[#allocation7 + $0x34] sm:$0xf]
        %v656 = vld [vmem:[#allocation7 + $0x38] sm:$0xf]
        %v657 = vld [vmem:[#allocation7 + $0x3c] sm:$0xf]
        %v658 = vpack.c.bf16 %v641, %v641
        %v675 = vunpack.c.l.b16 %v642
        %v676 = vunpack.c.l.b16 %v643
        %v677 = vunpack.c.l.b16 %v644
        %v678 = vunpack.c.l.b16 %v645
        %v679 = vunpack.c.l.b16 %v646
        %v680 = vunpack.c.l.b16 %v647
        %v681 = vunpack.c.l.b16 %v648
        %v682 = vunpack.c.l.b16 %v649
        %v683 = vunpack.c.l.b16 %v650
        %v684 = vunpack.c.l.b16 %v651
        %v685 = vunpack.c.l.b16 %v652
        %v686 = vunpack.c.l.b16 %v653
        %v687 = vunpack.c.l.b16 %v654
        %v688 = vunpack.c.l.b16 %v655
        %v689 = vunpack.c.l.b16 %v656
        %v690 = vunpack.c.l.b16 %v657
        %v691 = vpack.c.b16 %v676, %v675
        %v692 = vpack.c.b16 %v678, %v677
        %v693 = vpack.c.b16 %v680, %v679
        %v694 = vpack.c.b16 %v682, %v681
        %v695 = vpack.c.b16 %v684, %v683
        %v696 = vpack.c.b16 %v686, %v685
        %v697 = vpack.c.b16 %v688, %v687
        %v698 = vpack.c.b16 %v690, %v689
        %707 = vmatpush.bf16.msra.mxu0 %v698
        %708 = vmatpush.bf16.msra.mxu0 %v697
        %709 = vmatpush.bf16.msra.mxu0 %v696
        %710 = vmatpush.bf16.msra.mxu0 %v695
        %711 = vmatpush.bf16.msra.mxu0 %v694
        %712 = vmatpush.bf16.msra.mxu0 %v693
        %713 = vmatpush.bf16.msra.mxu0 %v692
        %714 = vmatpush.bf16.msra.mxu0 %v691
        %715 = vmatmul.bf16.gmra.mxu0 %v658
        %v716 = vpop.f32.mrf.mxu0
        %v717 = vadd.f32 0.0, %v716
        %v718 = vpop.f32.mrf.mxu0
        %719 = vdwg.mxu0
        %720 = vst [vmem:[%s268] sm:$0xff] %v717
        %s721 = sand.u32 %s139, 1
        %s722 = scalar_lea.sflag [#allocation4], %s721
        %s723 = sand.u32 %s139, 1
        %s724 = smul.addr %s723, 8
        %s725 = scalar_lea.vmem [#allocation8], %s724
        // Predicated region
        $region53: #{tpu_custom_call.1} parent=39 // pred_check
          %p726 = pneg %p149
        $region54: #{tpu_custom_call.1} parent=39 // pred_check_branch
          %728 = sbr.rel (%p726) target = $region56
        $region55: #{tpu_custom_call.1} parent=39 // pred_region
          %730 = vsyncadd %s722, 0
          %s731 = smul.addr %s21, 8
          %s732 = scalar_lea.hbm %s5, %s731
          %s734 = sshll.u32 %s725, 4
          %s735 = int_to_ptr.vmem [resolvable:$true] %s734
          %s736 = sshll.u32 %s732, 4
          %s737 = int_to_ptr.hbm [resolvable:$true] %s736
          %739 = dma.vmem_to_hbm [thread:$0]  %s735, 128, %s737, %s722
        $region56: #{tpu_custom_call.1} parent=39 // pred_fallthru
          _
      $region40: #{tpu_custom_call.1} parent=5 // pred_fallthru
        _
      %p740 = scmp.le.s32.totalorder 2, %s16
      // Predicated region
      $region57: #{tpu_custom_call.1} parent=5 // pred_check
        %p741 = pneg %p740
      $region58: #{tpu_custom_call.1} parent=5 // pred_check_branch
        %743 = sbr.rel (%p741) target = $region60
      $region59: #{tpu_custom_call.1} parent=5 // pred_region
        %s744 = ssub.s32 %s16, 2
        // Predicated region
        $region61: #{tpu_custom_call.1} parent=59 // pred_check
          %p745 = pneg %p155
        $region62: #{tpu_custom_call.1} parent=59 // pred_check_branch
          %747 = sbr.rel (%p745) target = $region64
        $region63: #{tpu_custom_call.1} parent=59 // pred_region
          %s748 = sand.u32 %s140, 1
          %s749 = scalar_lea.sflag [#allocation4], %s748
          %s750 = sand.u32 %s140, 1
          %s751 = smul.addr %s750, 8
          %s752 = scalar_lea.vmem [#allocation8], %s751
          %754 = dma.done %s749, 128
        $region64: #{tpu_custom_call.1} parent=59 // pred_fallthru
          _
      $region60: #{tpu_custom_call.1} parent=5 // pred_fallthru
        _
    $region6: #{tpu_custom_call.1} parent=1 // loop_footer
      %s20 = sadd.s32 1, %s16
    $region7: #{tpu_custom_call.1} parent=1 // loop_footer_branch
      %15 = sbr.rel target = $region3
    $region8: #{tpu_custom_call.1} parent=1 // loop_exit
      _
    %755 = vsyncpa [#allocation3], 1
    %s756 = scalar_lea.sflag [#allocation3], 1
    %757 = vsyncpa %s756, 1
    %758 = vsyncpa [#allocation6], 1
    %759 = vsyncpa [#allocation4], 1
    %s760 = scalar_lea.sflag [#allocation4], 1
    %761 = vsyncpa %s760, 1

// kernel: tpu_custom_call.1
$region0: #{tpu_custom_call.1}
  #allocation0 [shape = 'u32[]', space=smem, size = 0x4, offset = 0x4, fixed_abs, tag = 'smem constant byte address 0x4 - core index']
  #allocation1 [shape = 'u32[72,128]{1,0:T(1,128)}', space=vmem, size = 0x9000, scoped, tag = 'internal scratch']
  %s0 = inlined_call_operand.vmem [shape: bf16[64,8], index: 0, kind: input, shape index: {}]
  %s1 = inlined_call_operand.vmem [shape: bf16[8,128], index: 1, kind: input, shape index: {}]
  %s2 = inlined_call_operand.hbm [shape: bf16[256,128], index: 2, kind: input, shape index: {}]
  %s3 = inlined_call_operand.hbm [shape: bf16[256,128], index: 3, kind: input, shape index: {}]
  %s4 = inlined_call_operand.hbm [shape: bf16[128,128], index: 4, kind: input, shape index: {}]
  %s5 = inlined_call_operand.hbm [shape: f32[16,128], index: 5, kind: output, shape index: {}]
  %s6 = sld [smem:[#allocation0]]
  $region65: #{tpu_custom_call.1} parent=0
    _
  %s8 = ssub.s32 1, %s6
  %s9 = scalar_select 0, %s8, %s6
  $region1: #{tpu_custom_call.1} parent=0
    #allocation2 [shape = 'u8[65536]{0}', space=vmem, size = 0x10000, scoped, tag = 'input window, operand 2, single buffered']
    #allocation3 [shape = 's32[2]{0}', space=sflag, size = 0x8, scoped, tag = 'scoped memory for tpu_custom_call.1']
    #allocation4 [shape = 's32[2]{0}', space=sflag, size = 0x8, scoped, tag = 'scoped memory for tpu_custom_call.1']
    #allocation5 [shape = 'u8[65536]{0}', space=vmem, size = 0x10000, scoped, tag = 'input window, operand 3, single buffered']
    #allocation6 [shape = 's32[1]{0}', space=sflag, size = 0x4, scoped, tag = 'scoped memory for tpu_custom_call.1']
    #allocation7 [shape = 'u8[32768]{0}', space=vmem, size = 0x8000, scoped, tag = 'input window, operand 4, single buffered']
    #allocation8 [shape = 'u8[8192]{0}', space=vmem, size = 0x2000, scoped, tag = 'output window, operand 0']
    %10 = vsyncpa [#allocation3], 0
    %11 = vsyncpa [#allocation6], 0
    %12 = vsyncpa [#allocation4], 0
    %s13 = scalar_lea.sflag [#allocation4], 1
    %14 = vsyncpa %s13, 0
    loop: start=0, step=1, limit=4
    $region2: #{tpu_custom_call.1} parent=1 // loop_pre_header
      _
    $region3: #{tpu_custom_call.1} parent=1 // loop_header
      %s16 = sphi 0, %s20
      %p17 = scmp.ge.s32.totalorder %s16, 4
      %s26 = sphi 0, %s28
      %s29 = sphi 0, %s26
      %s30 = sphi 0, %s29
      %s46 = sphi 0, %s30
      %s50 = sphi 0, %s50
      %s52 = sphi 0, %s50
      %s53 = sphi 0, %s52
      %s67 = sphi 0, %s53
      %s71 = sphi 0, %s71
      %s73 = sphi 0, %s71
      %s74 = sphi 0, %s73
      %s88 = sphi 0, %s74
      %s92 = sphi 0, %s92
      %s94 = sphi 0, %s92
      %s95 = sphi 0, %s94
      %s109 = sphi 0, %s95
      %s113 = sphi 0, %s113
      %s115 = sphi 0, %s113
      %s116 = sphi 0, %s115
      %s130 = sphi 0, %s116
      %s136 = sphi 0, %s138
      %s139 = sphi 0, %s136
      %s140 = sphi 0, %s139
      %s156 = sphi 0, %s140
    $region4: #{tpu_custom_call.1} parent=1 // loop_header_branch
      %19 = sbr.rel (%p17) target = $region8
    $region5: #{tpu_custom_call.1} parent=1 // loop_body
      %s21 = ssub.s32 %s16, 1
      %s22 = ssub.s32 %s16, 2
      %s23 = sadd.s32 %s16, 1
      %s24 = ssub.s32 %s16, %s23
      %p25 = scmp.eq.s32.totalorder %s24, 0
      %s27 = sadd.s32 %s26, 1
      %s28 = scalar_select %p25, %s26, %s27
      %p31 = pneg %p25
      %p32 = scmp.eq.s32.totalorder %s16, 1
      %p33 = por %p31, %p32
      %p34 = scmp.ne.s32.totalorder %s26, %s29
      %p35 = scmp.eq.s32.totalorder %s16, 0
      %p36 = por %p34, %p35
      %p37 = scmp.ne.s32.totalorder %s26, %s29
      %p38 = scmp.eq.s32.totalorder %s21, 1
      %p39 = por %p37, %p38
      %p40 = scmp.ne.s32.totalorder %s29, %s30
      %p41 = scmp.eq.s32.totalorder %s21, 0
      %p42 = por %p40, %p41
      %p43 = scmp.ne.s32.totalorder %s29, %s30
      %p44 = scmp.eq.s32.totalorder %s22, 1
      %p45 = por %p43, %p44
      %p47 = scmp.ne.s32.totalorder %s30, %s46
      %p48 = scmp.eq.s32.totalorder %s22, 0
      %p49 = por %p47, %p48
      %s51 = sadd.s32 %s50, 1
      %p54 = scmp.eq.s32.totalorder %s16, 1
      %p55 = scmp.ne.s32.totalorder %s50, %s52
      %p56 = scmp.eq.s32.totalorder %s16, 0
      %p57 = por %p55, %p56
      %p58 = scmp.ne.s32.totalorder %s50, %s52
      %p59 = scmp.eq.s32.totalorder %s21, 1
      %p60 = por %p58, %p59
      %p61 = scmp.ne.s32.totalorder %s52, %s53
      %p62 = scmp.eq.s32.totalorder %s21, 0
      %p63 = por %p61, %p62
      %p64 = scmp.ne.s32.totalorder %s52, %s53
      %p65 = scmp.eq.s32.totalorder %s22, 1
      %p66 = por %p64, %p65
      %p68 = scmp.ne.s32.totalorder %s53, %s67
      %p69 = scmp.eq.s32.totalorder %s22, 0
      %p70 = por %p68, %p69
      %s72 = sadd.s32 %s71, 1
      %p75 = scmp.eq.s32.totalorder %s16, 1
      %p76 = scmp.ne.s32.totalorder %s71, %s73
      %p77 = scmp.eq.s32.totalorder %s16, 0
      %p78 = por %p76, %p77
      %p79 = scmp.ne.s32.totalorder %s71, %s73
      %p80 = scmp.eq.s32.totalorder %s21, 1
      %p81 = por %p79, %p80
      %p82 = scmp.ne.s32.totalorder %s73, %s74
      %p83 = scmp.eq.s32.totalorder %s21, 0
      %p84 = por %p82, %p83
      %p85 = scmp.ne.s32.totalorder %s73, %s74
      %p86 = scmp.eq.s32.totalorder %s22, 1
      %p87 = por %p85, %p86
      %p89 = scmp.ne.s32.totalorder %s74, %s88
      %p90 = scmp.eq.s32.totalorder %s22, 0
      %p91 = por %p89, %p90
      %s93 = sadd.s32 %s92, 1
      %p96 = scmp.eq.s32.totalorder %s16, 1
      %p97 = scmp.ne.s32.totalorder %s92, %s94
      %p98 = scmp.eq.s32.totalorder %s16, 0
      %p99 = por %p97, %p98
      %p100 = scmp.ne.s32.totalorder %s92, %s94
      %p101 = scmp.eq.s32.totalorder %s21, 1
      %p102 = por %p100, %p101
      %p103 = scmp.ne.s32.totalorder %s94, %s95
      %p104 = scmp.eq.s32.totalorder %s21, 0
      %p105 = por %p103, %p104
      %p106 = scmp.ne.s32.totalorder %s94, %s95
      %p107 = scmp.eq.s32.totalorder %s22, 1
      %p108 = por %p106, %p107
      %p110 = scmp.ne.s32.totalorder %s95, %s109
      %p111 = scmp.eq.s32.totalorder %s22, 0
      %p112 = por %p110, %p111
      %s114 = sadd.s32 %s113, 1
      %p117 = scmp.eq.s32.totalorder %s16, 1
      %p118 = scmp.ne.s32.totalorder %s113, %s115
      %p119 = scmp.eq.s32.totalorder %s16, 0
      %p120 = por %p118, %p119
      %p121 = scmp.ne.s32.totalorder %s113, %s115
      %p122 = scmp.eq.s32.totalorder %s21, 1
      %p123 = por %p121, %p122
      %p124 = scmp.ne.s32.totalorder %s115, %s116
      %p125 = scmp.eq.s32.totalorder %s21, 0
      %p126 = por %p124, %p125
      %p127 = scmp.ne.s32.totalorder %s115, %s116
      %p128 = scmp.eq.s32.totalorder %s22, 1
      %p129 = por %p127, %p128
      %p131 = scmp.ne.s32.totalorder %s116, %s130
      %p132 = scmp.eq.s32.totalorder %s22, 0
      %p133 = por %p131, %p132
      %s134 = ssub.s32 %s16, %s23
      %p135 = scmp.eq.s32.totalorder %s134, 0
      %s137 = sadd.s32 %s136, 1
      %s138 = scalar_select %p135, %s136, %s137
      %p141 = pneg %p135
      %p142 = scmp.eq.s32.totalorder %s16, 1
      %p143 = por %p141, %p142
      %p144 = scmp.ne.s32.totalorder %s136, %s139
      %p145 = scmp.eq.s32.totalorder %s16, 0
      %p146 = por %p144, %p145
      %p147 = scmp.ne.s32.totalorder %s136, %s139
      %p148 = scmp.eq.s32.totalorder %s21, 1
      %p149 = por %p147, %p148
      %p150 = scmp.ne.s32.totalorder %s139, %s140
      %p151 = scmp.eq.s32.totalorder %s21, 0
      %p152 = por %p150, %p151
      %p153 = scmp.ne.s32.totalorder %s139, %s140
      %p154 = scmp.eq.s32.totalorder %s22, 1
      %p155 = por %p153, %p154
      %p157 = scmp.ne.s32.totalorder %s140, %s156
      %p158 = scmp.eq.s32.totalorder %s22, 0
      %p159 = por %p157, %p158
      %p160 = scmp.le.s32.totalorder 1, %s16
      %p161 = scmp.lt.s32.totalorder %s16, 3
      %p162 = pnand %p160, %p161
      %p163 = pneg %p162
      // Predicated region
      $region9: #{tpu_custom_call.1} parent=5 // pred_check
        _
      $region10: #{tpu_custom_call.1} parent=5 // pred_check_branch
        %165 = sbr.rel (%p162) target = $region12
      $region11: #{tpu_custom_call.1} parent=5 // pred_region
        %s166 = ssub.s32 %s16, 1
        // Predicated region
        $region13: #{tpu_custom_call.1} parent=11 // pred_check
          %p167 = pneg %p63
        $region14: #{tpu_custom_call.1} parent=11 // pred_check_branch
          %169 = sbr.rel (%p167) target = $region16
        $region15: #{tpu_custom_call.1} parent=11 // pred_region
          _
        $region16: #{tpu_custom_call.1} parent=11 // pred_fallthru
          _
        // Predicated region
        $region17: #{tpu_custom_call.1} parent=11 // pred_check
          %p170 = pneg %p84
        $region18: #{tpu_custom_call.1} parent=11 // pred_check_branch
          %172 = sbr.rel (%p170) target = $region20
        $region19: #{tpu_custom_call.1} parent=11 // pred_region
          %174 = vsyncadd [#allocation3], 0
          %s175 = sshll.u32 %s2, 4
          %s176 = int_to_ptr.hbm [resolvable:$true] %s175
          %s177 = sshll.u32 [#allocation2], 4
          %s178 = int_to_ptr.vmem [resolvable:$true] %s177
          %183 = dma.hbm_to_vmem [thread:$0]  %s176, 2048, %s178, [#allocation3], 64, 64, 4
        $region20: #{tpu_custom_call.1} parent=11 // pred_fallthru
          _
        // Predicated region
        $region21: #{tpu_custom_call.1} parent=11 // pred_check
          %p184 = pneg %p105
        $region22: #{tpu_custom_call.1} parent=11 // pred_check_branch
          %186 = sbr.rel (%p184) target = $region24
        $region23: #{tpu_custom_call.1} parent=11 // pred_region
          %188 = vsyncadd [#allocation6], 0
          %s189 = sshll.u32 %s3, 4
          %s190 = int_to_ptr.hbm [resolvable:$true] %s189
          %s191 = sshll.u32 [#allocation5], 4
          %s192 = int_to_ptr.vmem [resolvable:$true] %s191
          %197 = dma.hbm_to_vmem [thread:$0]  %s190, 2048, %s192, [#allocation6], 64, 64, 4
        $region24: #{tpu_custom_call.1} parent=11 // pred_fallthru
          _
        // Predicated region
        $region25: #{tpu_custom_call.1} parent=11 // pred_check
          %p198 = pneg %p126
        $region26: #{tpu_custom_call.1} parent=11 // pred_check_branch
          %200 = sbr.rel (%p198) target = $region28
        $region27: #{tpu_custom_call.1} parent=11 // pred_region
          %202 = vsyncadd [#allocation6], 0
          %s203 = sshll.u32 %s4, 4
          %s204 = int_to_ptr.hbm [resolvable:$true] %s203
          %s205 = sshll.u32 [#allocation7], 4
          %s206 = int_to_ptr.vmem [resolvable:$true] %s205
          %211 = dma.hbm_to_vmem [thread:$0]  %s204, 1024, %s206, [#allocation6], 64, 64, 4
        $region28: #{tpu_custom_call.1} parent=11 // pred_fallthru
          _
      $region12: #{tpu_custom_call.1} parent=5 // pred_fallthru
        _
      %p212 = scmp.lt.s32.totalorder %s16, 2
      // Predicated region
      $region29: #{tpu_custom_call.1} parent=5 // pred_check
        %p213 = pneg %p212
      $region30: #{tpu_custom_call.1} parent=5 // pred_check_branch
        %215 = sbr.rel (%p213) target = $region32
      $region31: #{tpu_custom_call.1} parent=5 // pred_region
        // Predicated region
        $region33: #{tpu_custom_call.1} parent=31 // pred_check
          %p216 = pneg %p36
        $region34: #{tpu_custom_call.1} parent=31 // pred_check_branch
          %218 = sbr.rel (%p216) target = $region36
        $region35: #{tpu_custom_call.1} parent=31 // pred_region
          %s219 = smul.u32 4, %s16
          %p220 = scmp.lt.s32.totalorder %s219, 7
          %s221 = scalar_select %p220, %s219, 7
          %s222 = smul.addr %s221, 4
          %s223 = scalar_lea.vmem %s0, %s222
          %s224 = smul.u32 4, %s16
        $region36: #{tpu_custom_call.1} parent=31 // pred_fallthru
          _
      $region32: #{tpu_custom_call.1} parent=5 // pred_fallthru
        _
      %p225 = scmp.le.s32.totalorder 1, %s16
      %p226 = scmp.lt.s32.totalorder %s16, 3
      %p227 = pnand %p225, %p226
      %p228 = pneg %p227
      // Predicated region
      $region37: #{tpu_custom_call.1} parent=5 // pred_check
        _
      $region38: #{tpu_custom_call.1} parent=5 // pred_check_branch
        %230 = sbr.rel (%p227) target = $region40
      $region39: #{tpu_custom_call.1} parent=5 // pred_region
        %s231 = ssub.s32 %s16, 1
        // Predicated region
        $region41: #{tpu_custom_call.1} parent=39 // pred_check
          %p232 = pneg %p84
        $region42: #{tpu_custom_call.1} parent=39 // pred_check_branch
          %234 = sbr.rel (%p232) target = $region44
        $region43: #{tpu_custom_call.1} parent=39 // pred_region
          %236 = dma.done [#allocation3], 2048
        $region44: #{tpu_custom_call.1} parent=39 // pred_fallthru
          _
        // Predicated region
        $region45: #{tpu_custom_call.1} parent=39 // pred_check
          %p237 = pneg %p105
        $region46: #{tpu_custom_call.1} parent=39 // pred_check_branch
          %239 = sbr.rel (%p237) target = $region48
        $region47: #{tpu_custom_call.1} parent=39 // pred_region
          %241 = dma.done [#allocation6], 2048
        $region48: #{tpu_custom_call.1} parent=39 // pred_fallthru
          _
        // Predicated region
        $region49: #{tpu_custom_call.1} parent=39 // pred_check
          %p242 = pneg %p126
        $region50: #{tpu_custom_call.1} parent=39 // pred_check_branch
          %244 = sbr.rel (%p242) target = $region52
        $region51: #{tpu_custom_call.1} parent=39 // pred_region
          %246 = dma.done [#allocation6], 1024
        $region52: #{tpu_custom_call.1} parent=39 // pred_fallthru
          _
        %s247 = smul.u32 4, %s21
        %p248 = scmp.lt.s32.totalorder %s247, 7
        %s249 = scalar_select %p248, %s247, 7
        %s250 = smul.addr %s249, 4
        %s251 = scalar_lea.vmem %s0, %s250
        %p252 = pneg %p42
        %p253 = pneg %p39
        %p254 = pneg %p63
        %p255 = pneg %p60
        %p256 = pneg %p84
        %p257 = pneg %p81
        %p258 = pneg %p105
        %p259 = pneg %p102
        %p260 = pneg %p126
        %p261 = pneg %p123
        %p262 = pneg %p152
        %p263 = pneg %p149
        %s264 = sand.u32 %s139, 1
        %s265 = scalar_lea.sflag [#allocation4], %s264
        %s266 = sand.u32 %s139, 1
        %s267 = smul.addr %s266, 8
        %s268 = scalar_lea.vmem [#allocation8], %s267
        %s269 = smul.u32 4, %s21
        %p270 = scmp.lt.s32.totalorder %s269, 7
        %s271 = scalar_select %p270, %s269, 7
        %s272 = smul.addr %s271, 4
        %s273 = scalar_lea.vmem %s0, %s272
        %s274 = smul.u32 4, %s21
        %v276 = vld [vmem:[%s273] sm:$0xf]
        %v277 = vld [vmem:[%s273 + $0x4] sm:$0xf]
        %v278 = vld [vmem:[%s273 + $0x8] sm:$0xf]
        %v279 = vld [vmem:[%s273 + $0xc] sm:$0xf]
        %v280 = vld [vmem:[%s1] sm:$0xf]
        %v285 = vunpack.c.l.b16 %v276
        %v286 = vunpack.c.l.b16 %v277
        %v287 = vunpack.c.l.b16 %v278
        %v288 = vunpack.c.l.b16 %v279
        %v289 = vpack.c.b16 %v286, %v285
        %v290 = vpack.c.b16 %v288, %v287
        %vm291 = vcmask 64512
        %v293 = vsel %vm291, %v289, 0
        %v296 = vsel %vm291, %v290, 0
        %vm298 = vcmask 1043456
        %v300 = vsel %vm298, %v280, 0
        %302 = vmatpush.bf16.msra.mxu0 0
        %303 = vmatpush.bf16.msra.mxu0 0
        %304 = vmatpush.bf16.msra.mxu0 0
        %305 = vmatpush.bf16.msra.mxu0 0
        %306 = vmatpush.bf16.msra.mxu0 0
        %307 = vmatpush.bf16.msra.mxu0 0
        %308 = vmatpush.bf16.msra.mxu0 0
        %309 = vmatpush.bf16.msra.mxu0 %v300
        %310 = vmatmul.bf16.gmra.mxu0 %v293
        %v311 = vpop.f32.mrf.mxu0
        %v312 = vadd.f32 0.0, %v311
        %v313 = vpop.f32.mrf.mxu0
        %v314 = vadd.f32 0.0, %v313
        %315 = vmatmul.bf16.gmra.mxu0 %v296
        %v316 = vpop.f32.mrf.mxu0
        %v317 = vadd.f32 0.0, %v316
        %v318 = vpop.f32.mrf.mxu0
        %v319 = vadd.f32 0.0, %v318
        %320 = vdwg.mxu0
        %v321 = vmax.f32 %v312, 0.0
        %v322 = vmax.f32 %v314, 0.0
        %v323 = vmax.f32 %v317, 0.0
        %v324 = vmax.f32 %v319, 0.0
        %v325 = vpack.c.bf16 %v322, %v321
        %v326 = vpack.c.bf16 %v324, %v323
        %v327 = vld [vmem:[#allocation2] sm:$0xf]
        %v328 = vld [vmem:[#allocation2 + $0x4] sm:$0xf]
        %v329 = vld [vmem:[#allocation2 + $0x8] sm:$0xf]
        %v330 = vld [vmem:[#allocation2 + $0xc] sm:$0xf]
        %v331 = vld [vmem:[#allocation2 + $0x10] sm:$0xf]
        %v332 = vld [vmem:[#allocation2 + $0x14] sm:$0xf]
        %v333 = vld [vmem:[#allocation2 + $0x18] sm:$0xf]
        %v334 = vld [vmem:[#allocation2 + $0x1c] sm:$0xf]
        %v335 = vld [vmem:[#allocation2 + $0x20] sm:$0xf]
        %v336 = vld [vmem:[#allocation2 + $0x24] sm:$0xf]
        %v337 = vld [vmem:[#allocation2 + $0x28] sm:$0xf]
        %v338 = vld [vmem:[#allocation2 + $0x2c] sm:$0xf]
        %v339 = vld [vmem:[#allocation2 + $0x30] sm:$0xf]
        %v340 = vld [vmem:[#allocation2 + $0x34] sm:$0xf]
        %v341 = vld [vmem:[#allocation2 + $0x38] sm:$0xf]
        %v342 = vld [vmem:[#allocation2 + $0x3c] sm:$0xf]
        %v343 = vld [vmem:[#allocation2 + $0x40] sm:$0xf]
        %v344 = vld [vmem:[#allocation2 + $0x44] sm:$0xf]
        %v345 = vld [vmem:[#allocation2 + $0x48] sm:$0xf]
        %v346 = vld [vmem:[#allocation2 + $0x4c] sm:$0xf]
        %v347 = vld [vmem:[#allocation2 + $0x50] sm:$0xf]
        %v348 = vld [vmem:[#allocation2 + $0x54] sm:$0xf]
        %v349 = vld [vmem:[#allocation2 + $0x58] sm:$0xf]
        %v350 = vld [vmem:[#allocation2 + $0x5c] sm:$0xf]
        %v351 = vld [vmem:[#allocation2 + $0x60] sm:$0xf]
        %v352 = vld [vmem:[#allocation2 + $0x64] sm:$0xf]
        %v353 = vld [vmem:[#allocation2 + $0x68] sm:$0xf]
        %v354 = vld [vmem:[#allocation2 + $0x6c] sm:$0xf]
        %v355 = vld [vmem:[#allocation2 + $0x70] sm:$0xf]
        %v356 = vld [vmem:[#allocation2 + $0x74] sm:$0xf]
        %v357 = vld [vmem:[#allocation2 + $0x78] sm:$0xf]
        %v358 = vld [vmem:[#allocation2 + $0x7c] sm:$0xf]
        %v391 = vunpack.c.l.b16 %v327
        %v392 = vunpack.c.l.b16 %v328
        %v393 = vunpack.c.l.b16 %v329
        %v394 = vunpack.c.l.b16 %v330
        %v395 = vunpack.c.l.b16 %v331
        %v396 = vunpack.c.l.b16 %v332
        %v397 = vunpack.c.l.b16 %v333
        %v398 = vunpack.c.l.b16 %v334
        %v399 = vunpack.c.l.b16 %v335
        %v400 = vunpack.c.l.b16 %v336
        %v401 = vunpack.c.l.b16 %v337
        %v402 = vunpack.c.l.b16 %v338
        %v403 = vunpack.c.l.b16 %v339
        %v404 = vunpack.c.l.b16 %v340
        %v405 = vunpack.c.l.b16 %v341
        %v406 = vunpack.c.l.b16 %v342
        %v407 = vunpack.c.l.b16 %v343
        %v408 = vunpack.c.l.b16 %v344
        %v409 = vunpack.c.l.b16 %v345
        %v410 = vunpack.c.l.b16 %v346
        %v411 = vunpack.c.l.b16 %v347
        %v412 = vunpack.c.l.b16 %v348
        %v413 = vunpack.c.l.b16 %v349
        %v414 = vunpack.c.l.b16 %v350
        %v415 = vunpack.c.l.b16 %v351
        %v416 = vunpack.c.l.b16 %v352
        %v417 = vunpack.c.l.b16 %v353
        %v418 = vunpack.c.l.b16 %v354
        %v419 = vunpack.c.l.b16 %v355
        %v420 = vunpack.c.l.b16 %v356
        %v421 = vunpack.c.l.b16 %v357
        %v422 = vunpack.c.l.b16 %v358
        %v423 = vpack.c.b16 %v392, %v391
        %v424 = vpack.c.b16 %v394, %v393
        %v425 = vpack.c.b16 %v396, %v395
        %v426 = vpack.c.b16 %v398, %v397
        %v427 = vpack.c.b16 %v400, %v399
        %v428 = vpack.c.b16 %v402, %v401
        %v429 = vpack.c.b16 %v404, %v403
        %v430 = vpack.c.b16 %v406, %v405
        %v431 = vpack.c.b16 %v408, %v407
        %v432 = vpack.c.b16 %v410, %v409
        %v433 = vpack.c.b16 %v412, %v411
        %v434 = vpack.c.b16 %v414, %v413
        %v435 = vpack.c.b16 %v416, %v415
        %v436 = vpack.c.b16 %v418, %v417
        %v437 = vpack.c.b16 %v420, %v419
        %v438 = vpack.c.b16 %v422, %v421
        %455 = vmatpush.bf16.msra.mxu0 %v430
        %456 = vmatpush.bf16.msra.mxu0 %v429
        %457 = vmatpush.bf16.msra.mxu0 %v428
        %458 = vmatpush.bf16.msra.mxu0 %v427
        %459 = vmatpush.bf16.msra.mxu0 %v426
        %460 = vmatpush.bf16.msra.mxu0 %v425
        %461 = vmatpush.bf16.msra.mxu0 %v424
        %462 = vmatpush.bf16.msra.mxu0 %v423
        %463 = vmatmul.bf16.gmra.mxu0 %v325
        %v464 = vpop.f32.mrf.mxu0
        %v465 = vadd.f32 0.0, %v464
        %v466 = vpop.f32.mrf.mxu0
        %v467 = vadd.f32 0.0, %v466
        %468 = vdwg.mxu0
        %469 = vmatpush.bf16.msra.mxu0 %v438
        %470 = vmatpush.bf16.msra.mxu0 %v437
        %471 = vmatpush.bf16.msra.mxu0 %v436
        %472 = vmatpush.bf16.msra.mxu0 %v435
        %473 = vmatpush.bf16.msra.mxu0 %v434
        %474 = vmatpush.bf16.msra.mxu0 %v433
        %475 = vmatpush.bf16.msra.mxu0 %v432
        %476 = vmatpush.bf16.msra.mxu0 %v431
        %477 = vmatmul.bf16.gmra.mxu0 %v326
        %v478 = vpop.f32.mrf.mxu0
        %v479 = vadd.f32 %v465, %v478
        %v480 = vpop.f32.mrf.mxu0
        %v481 = vadd.f32 %v467, %v480
        %482 = vdwg.mxu0
        %v483 = vmax.f32 %v479, 0.0
        %v484 = vmax.f32 %v481, 0.0
        %v485 = vpack.c.bf16 %v483, %v483
        %v486 = vpack.c.bf16 %v484, %v484
        %v487 = vld [vmem:[#allocation5] sm:$0xf]
        %v488 = vld [vmem:[#allocation5 + $0x4] sm:$0xf]
        %v489 = vld [vmem:[#allocation5 + $0x8] sm:$0xf]
        %v490 = vld [vmem:[#allocation5 + $0xc] sm:$0xf]
        %v491 = vld [vmem:[#allocation5 + $0x10] sm:$0xf]
        %v492 = vld [vmem:[#allocation5 + $0x14] sm:$0xf]
        %v493 = vld [vmem:[#allocation5 + $0x18] sm:$0xf]
        %v494 = vld [vmem:[#allocation5 + $0x1c] sm:$0xf]
        %v495 = vld [vmem:[#allocation5 + $0x20] sm:$0xf]
        %v496 = vld [vmem:[#allocation5 + $0x24] sm:$0xf]
        %v497 = vld [vmem:[#allocation5 + $0x28] sm:$0xf]
        %v498 = vld [vmem:[#allocation5 + $0x2c] sm:$0xf]
        %v499 = vld [vmem:[#allocation5 + $0x30] sm:$0xf]
        %v500 = vld [vmem:[#allocation5 + $0x34] sm:$0xf]
        %v501 = vld [vmem:[#allocation5 + $0x38] sm:$0xf]
        %v502 = vld [vmem:[#allocation5 + $0x3c] sm:$0xf]
        %v503 = vld [vmem:[#allocation5 + $0x40] sm:$0xf]
        %v504 = vld [vmem:[#allocation5 + $0x44] sm:$0xf]
        %v505 = vld [vmem:[#allocation5 + $0x48] sm:$0xf]
        %v506 = vld [vmem:[#allocation5 + $0x4c] sm:$0xf]
        %v507 = vld [vmem:[#allocation5 + $0x50] sm:$0xf]
        %v508 = vld [vmem:[#allocation5 + $0x54] sm:$0xf]
        %v509 = vld [vmem:[#allocation5 + $0x58] sm:$0xf]
        %v510 = vld [vmem:[#allocation5 + $0x5c] sm:$0xf]
        %v511 = vld [vmem:[#allocation5 + $0x60] sm:$0xf]
        %v512 = vld [vmem:[#allocation5 + $0x64] sm:$0xf]
        %v513 = vld [vmem:[#allocation5 + $0x68] sm:$0xf]
        %v514 = vld [vmem:[#allocation5 + $0x6c] sm:$0xf]
        %v515 = vld [vmem:[#allocation5 + $0x70] sm:$0xf]
        %v516 = vld [vmem:[#allocation5 + $0x74] sm:$0xf]
        %v517 = vld [vmem:[#allocation5 + $0x78] sm:$0xf]
        %v518 = vld [vmem:[#allocation5 + $0x7c] sm:$0xf]
        %v551 = vunpack.c.l.b16 %v487
        %v552 = vunpack.c.l.b16 %v488
        %v553 = vunpack.c.l.b16 %v489
        %v554 = vunpack.c.l.b16 %v490
        %v555 = vunpack.c.l.b16 %v491
        %v556 = vunpack.c.l.b16 %v492
        %v557 = vunpack.c.l.b16 %v493
        %v558 = vunpack.c.l.b16 %v494
        %v559 = vunpack.c.l.b16 %v495
        %v560 = vunpack.c.l.b16 %v496
        %v561 = vunpack.c.l.b16 %v497
        %v562 = vunpack.c.l.b16 %v498
        %v563 = vunpack.c.l.b16 %v499
        %v564 = vunpack.c.l.b16 %v500
        %v565 = vunpack.c.l.b16 %v501
        %v566 = vunpack.c.l.b16 %v502
        %v567 = vunpack.c.l.b16 %v503
        %v568 = vunpack.c.l.b16 %v504
        %v569 = vunpack.c.l.b16 %v505
        %v570 = vunpack.c.l.b16 %v506
        %v571 = vunpack.c.l.b16 %v507
        %v572 = vunpack.c.l.b16 %v508
        %v573 = vunpack.c.l.b16 %v509
        %v574 = vunpack.c.l.b16 %v510
        %v575 = vunpack.c.l.b16 %v511
        %v576 = vunpack.c.l.b16 %v512
        %v577 = vunpack.c.l.b16 %v513
        %v578 = vunpack.c.l.b16 %v514
        %v579 = vunpack.c.l.b16 %v515
        %v580 = vunpack.c.l.b16 %v516
        %v581 = vunpack.c.l.b16 %v517
        %v582 = vunpack.c.l.b16 %v518
        %v583 = vpack.c.b16 %v552, %v551
        %v584 = vpack.c.b16 %v554, %v553
        %v585 = vpack.c.b16 %v556, %v555
        %v586 = vpack.c.b16 %v558, %v557
        %v587 = vpack.c.b16 %v560, %v559
        %v588 = vpack.c.b16 %v562, %v561
        %v589 = vpack.c.b16 %v564, %v563
        %v590 = vpack.c.b16 %v566, %v565
        %v591 = vpack.c.b16 %v568, %v567
        %v592 = vpack.c.b16 %v570, %v569
        %v593 = vpack.c.b16 %v572, %v571
        %v594 = vpack.c.b16 %v574, %v573
        %v595 = vpack.c.b16 %v576, %v575
        %v596 = vpack.c.b16 %v578, %v577
        %v597 = vpack.c.b16 %v580, %v579
        %v598 = vpack.c.b16 %v582, %v581
        %615 = vmatpush.bf16.msra.mxu0 %v590
        %616 = vmatpush.bf16.msra.mxu0 %v589
        %617 = vmatpush.bf16.msra.mxu0 %v588
        %618 = vmatpush.bf16.msra.mxu0 %v587
        %619 = vmatpush.bf16.msra.mxu0 %v586
        %620 = vmatpush.bf16.msra.mxu0 %v585
        %621 = vmatpush.bf16.msra.mxu0 %v584
        %622 = vmatpush.bf16.msra.mxu0 %v583
        %623 = vmatmul.bf16.gmra.mxu0 %v485
        %v624 = vpop.f32.mrf.mxu0
        %v625 = vadd.f32 0.0, %v624
        %v626 = vpop.f32.mrf.mxu0
        %627 = vdwg.mxu0
        %628 = vmatpush.bf16.msra.mxu0 %v598
        %629 = vmatpush.bf16.msra.mxu0 %v597
        %630 = vmatpush.bf16.msra.mxu0 %v596
        %631 = vmatpush.bf16.msra.mxu0 %v595
        %632 = vmatpush.bf16.msra.mxu0 %v594
        %633 = vmatpush.bf16.msra.mxu0 %v593
        %634 = vmatpush.bf16.msra.mxu0 %v592
        %635 = vmatpush.bf16.msra.mxu0 %v591
        %636 = vmatmul.bf16.gmra.mxu0 %v486
        %v637 = vpop.f32.mrf.mxu0
        %v638 = vadd.f32 %v625, %v637
        %v639 = vpop.f32.mrf.mxu0
        %640 = vdwg.mxu0
        %v641 = vmax.f32 %v638, 0.0
        %v642 = vld [vmem:[#allocation7] sm:$0xf]
        %v643 = vld [vmem:[#allocation7 + $0x4] sm:$0xf]
        %v644 = vld [vmem:[#allocation7 + $0x8] sm:$0xf]
        %v645 = vld [vmem:[#allocation7 + $0xc] sm:$0xf]
        %v646 = vld [vmem:[#allocation7 + $0x10] sm:$0xf]
        %v647 = vld [vmem:[#allocation7 + $0x14] sm:$0xf]
        %v648 = vld [vmem:[#allocation7 + $0x18] sm:$0xf]
        %v649 = vld [vmem:[#allocation7 + $0x1c] sm:$0xf]
        %v650 = vld [vmem:[#allocation7 + $0x20] sm:$0xf]
        %v651 = vld [vmem:[#allocation7 + $0x24] sm:$0xf]
        %v652 = vld [vmem:[#allocation7 + $0x28] sm:$0xf]
        %v653 = vld [vmem:[#allocation7 + $0x2c] sm:$0xf]
        %v654 = vld [vmem:[#allocation7 + $0x30] sm:$0xf]
        %v655 = vld [vmem:[#allocation7 + $0x34] sm:$0xf]
        %v656 = vld [vmem:[#allocation7 + $0x38] sm:$0xf]
        %v657 = vld [vmem:[#allocation7 + $0x3c] sm:$0xf]
        %v658 = vpack.c.bf16 %v641, %v641
        %v675 = vunpack.c.l.b16 %v642
        %v676 = vunpack.c.l.b16 %v643
        %v677 = vunpack.c.l.b16 %v644
        %v678 = vunpack.c.l.b16 %v645
        %v679 = vunpack.c.l.b16 %v646
        %v680 = vunpack.c.l.b16 %v647
        %v681 = vunpack.c.l.b16 %v648
        %v682 = vunpack.c.l.b16 %v649
        %v683 = vunpack.c.l.b16 %v650
        %v684 = vunpack.c.l.b16 %v651
        %v685 = vunpack.c.l.b16 %v652
        %v686 = vunpack.c.l.b16 %v653
        %v687 = vunpack.c.l.b16 %v654
        %v688 = vunpack.c.l.b16 %v655
        %v689 = vunpack.c.l.b16 %v656
        %v690 = vunpack.c.l.b16 %v657
        %v691 = vpack.c.b16 %v676, %v675
        %v692 = vpack.c.b16 %v678, %v677
        %v693 = vpack.c.b16 %v680, %v679
        %v694 = vpack.c.b16 %v682, %v681
        %v695 = vpack.c.b16 %v684, %v683
        %v696 = vpack.c.b16 %v686, %v685
        %v697 = vpack.c.b16 %v688, %v687
        %v698 = vpack.c.b16 %v690, %v689
        %707 = vmatpush.bf16.msra.mxu0 %v698
        %708 = vmatpush.bf16.msra.mxu0 %v697
        %709 = vmatpush.bf16.msra.mxu0 %v696
        %710 = vmatpush.bf16.msra.mxu0 %v695
        %711 = vmatpush.bf16.msra.mxu0 %v694
        %712 = vmatpush.bf16.msra.mxu0 %v693
        %713 = vmatpush.bf16.msra.mxu0 %v692
        %714 = vmatpush.bf16.msra.mxu0 %v691
        %715 = vmatmul.bf16.gmra.mxu0 %v658
        %v716 = vpop.f32.mrf.mxu0
        %v717 = vadd.f32 0.0, %v716
        %v718 = vpop.f32.mrf.mxu0
        %719 = vdwg.mxu0
        %720 = vst [vmem:[%s268] sm:$0xff] %v717
        %s721 = sand.u32 %s139, 1
        %s722 = scalar_lea.sflag [#allocation4], %s721
        %s723 = sand.u32 %s139, 1
        %s724 = smul.addr %s723, 8
        %s725 = scalar_lea.vmem [#allocation8], %s724
        // Predicated region
        $region53: #{tpu_custom_call.1} parent=39 // pred_check
          %p726 = pneg %p149
        $region54: #{tpu_custom_call.1} parent=39 // pred_check_branch
          %728 = sbr.rel (%p726) target = $region56
        $region55: #{tpu_custom_call.1} parent=39 // pred_region
          %730 = vsyncadd %s722, 0
          %s731 = smul.addr %s21, 8
          %s732 = scalar_lea.hbm %s5, %s731
          %s734 = sshll.u32 %s725, 4
          %s735 = int_to_ptr.vmem [resolvable:$true] %s734
          %s736 = sshll.u32 %s732, 4
          %s737 = int_to_ptr.hbm [resolvable:$true] %s736
          %739 = dma.vmem_to_hbm [thread:$0]  %s735, 128, %s737, %s722
        $region56: #{tpu_custom_call.1} parent=39 // pred_fallthru
          _
      $region40: #{tpu_custom_call.1} parent=5 // pred_fallthru
        _
      %p740 = scmp.le.s32.totalorder 2, %s16
      // Predicated region
      $region57: #{tpu_custom_call.1} parent=5 // pred_check
        %p741 = pneg %p740
      $region58: #{tpu_custom_call.1} parent=5 // pred_check_branch
        %743 = sbr.rel (%p741) target = $region60
      $region59: #{tpu_custom_call.1} parent=5 // pred_region
        %s744 = ssub.s32 %s16, 2
        // Predicated region
        $region61: #{tpu_custom_call.1} parent=59 // pred_check
          %p745 = pneg %p155
        $region62: #{tpu_custom_call.1} parent=59 // pred_check_branch
          %747 = sbr.rel (%p745) target = $region64
        $region63: #{tpu_custom_call.1} parent=59 // pred_region
          %s748 = sand.u32 %s140, 1
          %s749 = scalar_lea.sflag [#allocation4], %s748
          %s750 = sand.u32 %s140, 1
          %s751 = smul.addr %s750, 8
          %s752 = scalar_lea.vmem [#allocation8], %s751
          %754 = dma.done %s749, 128
        $region64: #{tpu_custom_call.1} parent=59 // pred_fallthru
          _
      $region60: #{tpu_custom_call.1} parent=5 // pred_fallthru
        _
    $region6: #{tpu_custom_call.1} parent=1 // loop_footer
      %s20 = sadd.s32 1, %s16
    $region7: #{tpu_custom_call.1} parent=1 // loop_footer_branch
      %15 = sbr.rel target = $region3
    $region8: #{tpu_custom_call.1} parent=1 // loop_exit
      _
    %755 = vsyncpa [#allocation3], 1
    %s756 = scalar_lea.sflag [#allocation3], 1
    %757 = vsyncpa %s756, 1
    %758 = vsyncpa [#allocation6], 1
    %759 = vsyncpa [#allocation4], 1
    %s760 = scalar_lea.sflag [#allocation4], 1
    %761 = vsyncpa %s760, 1

</llo_original>
